<compile_context>
chip_gen: v7x
topology: tpu7x:2x2x1
jax: 0.10.0
libtpu: 0.0.40
codegen_flags: <defaults>
</compile_context>

<pallas_src>
import math
import functools

import numpy as np
import jax
import jax.numpy as jnp
from jax import lax
from jax.experimental import pallas as pl
from jax.experimental.pallas import tpu as pltpu

_MASK_VALUE = -0.7 * float(np.finfo(np.float32).max)


def _attention_kernel(n_heads, head_dim, x_ref, wqkv_ref, wo_ref, rope_ref, o_ref):
    S = x_ref.shape[1]
    D = x_ref.shape[2]
    H, hd = n_heads, head_dim
    hd2 = hd // 2

    # --- fused QKV projection: one MXU matmul, K = D, bf16 operands, f32 accumulate ---
    xb = x_ref[0]                                               # (S, D) bf16 (wrapper cast)
    qkv = jnp.dot(xb, wqkv_ref[...],
                  preferred_element_type=jnp.float32)           # (S, 3D) f32

    q2 = qkv[:, :D]
    k2 = qkv[:, D:2 * D]
    v2 = qkv[:, 2 * D:]

    # Per-head view (H, S, hd): lane-aligned slices (hd is a multiple of 128 at llama
    # scale) stacked along a new leading axis.
    def to_heads(t):
        return jnp.stack([t[:, h * hd:(h + 1) * hd] for h in range(H)], axis=0)

    q = to_heads(q2)                                            # (H, S, hd) f32
    k = to_heads(k2)
    v = to_heads(v2)

    # --- RoPE, roll-based rotate-half (q/k weight columns were pre-permuted so each
    #     head block is [real half | imag half]).  1/sqrt(hd) is folded into the q
    #     tables in the wrapper. ---
    cos_q = rope_ref[0][None]                                   # (1, S, hd) f32
    sin_q = rope_ref[1][None]
    cos_k = rope_ref[2][None]
    sin_k = rope_ref[3][None]

    qr = q * cos_q + pltpu.roll(q, hd2, 2) * sin_q              # scaled rope(q)
    kr = k * cos_k + pltpu.roll(k, hd2, 2) * sin_k              # rope(k)

    # --- scores + causal mask + softmax (stats in f32) ---
    s = jnp.einsum('hqd,hkd->hqk',
                   qr.astype(jnp.bfloat16), kr.astype(jnp.bfloat16),
                   preferred_element_type=jnp.float32)          # (H, S, S)
    row = lax.broadcasted_iota(jnp.int32, (S, S), 0)
    col = lax.broadcasted_iota(jnp.int32, (S, S), 1)
    s = jnp.where((col <= row)[None], s, _MASK_VALUE)

    m = jnp.max(s, axis=-1, keepdims=True)                      # (H, S, 1)
    p = jnp.exp(s - m)
    l = jnp.sum(p, axis=-1, keepdims=True)                      # (H, S, 1)

    # --- P @ V, normalize with approximate reciprocal (EUP slot) ---
    pv = jnp.einsum('hqk,hkd->hqd',
                    p.astype(jnp.bfloat16), v.astype(jnp.bfloat16),
                    preferred_element_type=jnp.float32)         # (H, S, hd)
    o = pv * pl.reciprocal(l, approx=True)

    # --- fused output projection across heads: one (S, D) @ (D, D) matmul, then a
    #     single lane-dense store (no accumulation over heads on the output ref) ---
    o_full = jnp.concatenate([o[h] for h in range(H)], axis=-1)  # (S, D)
    out = jnp.dot(o_full.astype(jnp.bfloat16), wo_ref[...],
                  preferred_element_type=jnp.float32)            # (S, D) f32
    o_ref[0] = out.astype(o_ref.dtype)


def attention_pallas(x, wq, wk, wv, wo, cos_hd, sin_hd, n_heads):
    """x: (B, S, D) f32; wq/wk/wv/wo: (D, D) torch-style (out_features, in_features);
    cos_hd/sin_hd: (S, head_dim//2) rotary tables."""
    B, S, D = x.shape
    hd = D // n_heads
    inv_scale = 1.0 / math.sqrt(hd)

    # Rotate-half (de-interleave) column permutation within each head, applied once to
    # the q AND k weight columns in the wrapper (scores are invariant because q and k
    # use the identical permutation); v / wo are left in the natural order.
    perm = np.concatenate([np.arange(0, hd, 2), np.arange(1, hd, 2)])
    cols = (np.arange(n_heads)[:, None] * hd + perm[None, :]).reshape(-1)   # (D,)

    wq_t, wk_t, wv_t, wo_t = wq.T, wk.T, wv.T, wo.T                         # (in, out)
    wqkv = jnp.concatenate([wq_t[:, cols], wk_t[:, cols], wv_t],
                           axis=-1).astype(jnp.bfloat16)                    # (D, 3D)
    wo_bf = wo_t.astype(jnp.bfloat16)                                       # (D, D)

    # Duplicated-half cos / signed sin tables; 1/sqrt(hd) folded into the q tables.
    cos_dup = jnp.concatenate([cos_hd, cos_hd], axis=-1)                    # (S, hd)
    sin_pm = jnp.concatenate([-sin_hd, sin_hd], axis=-1)                    # (S, hd)
    rope_tab = jnp.stack([cos_dup * inv_scale, sin_pm * inv_scale,
                          cos_dup, sin_pm], axis=0).astype(jnp.float32)     # (4, S, hd)

    x_bf = x.astype(jnp.bfloat16)

    kernel = functools.partial(_attention_kernel, n_heads, hd)

    return pl.pallas_call(
        kernel,
        out_shape=jax.ShapeDtypeStruct((B, S, D), jnp.float32),
        grid_spec=pltpu.PrefetchScalarGridSpec(
            num_scalar_prefetch=0,
            grid=(B,),                                  # heads folded into the body
            in_specs=[
                pl.BlockSpec((1, S, D), lambda b: (b, 0, 0)),       # x (bf16)
                pl.BlockSpec((D, 3 * D), lambda b: (0, 0)),         # fused qkv weights
                pl.BlockSpec((D, D), lambda b: (0, 0)),             # wo
                pl.BlockSpec((4, S, hd), lambda b: (0, 0, 0)),      # rope tables
            ],
            out_specs=pl.BlockSpec((1, S, D), lambda b: (b, 0, 0)),
        ),
        compiler_params=pltpu.CompilerParams(
            dimension_semantics=("parallel",),
            vmem_limit_bytes=32 * 1024 * 1024,
        ),
    )(x_bf, wqkv, wo_bf, rope_tab)


def attention_reference(x, wq, wk, wv, wo, cos_hd, sin_hd, n_heads):
    """Pure-JAX f32 reference mirroring the torch forward (prefill, causal)."""
    B, S, D = x.shape
    hd = D // n_heads
    scale = math.sqrt(hd)
    q = (x @ wq.T).reshape(B, S, n_heads, hd)
    k = (x @ wk.T).reshape(B, S, n_heads, hd)
    v = (x @ wv.T).reshape(B, S, n_heads, hd)

    def rope(t):
        tr, ti = t[..., 0::2], t[..., 1::2]
        c = cos_hd[None, :, None, :]
        s = sin_hd[None, :, None, :]
        o_r = tr * c - ti * s
        o_i = tr * s + ti * c
        return jnp.stack([o_r, o_i], axis=-1).reshape(t.shape)

    q, k = rope(q), rope(k)
    q = q.transpose(0, 2, 1, 3)          # (B, H, S, hd)
    kt = k.transpose(0, 2, 3, 1)         # (B, H, hd, S)
    v = v.transpose(0, 2, 1, 3)
    scores = jnp.matmul(q, kt) / scale
    mask = jnp.triu(jnp.full((S, S), -jnp.inf, jnp.float32), k=1)
    scores = scores + mask[None, None]
    p = jax.nn.softmax(scores, axis=-1)
    out = jnp.matmul(p, v).transpose(0, 2, 1, 3).reshape(B, S, D)
    return out @ wo.T


if __name__ == "__main__":
    # Small shapes, but with head_dim = 128 as the llama config implies (dim / n_heads),
    # so per-head lane slices and the RoPE roll are 128-lane aligned.
    B, S, n_heads, D = 2, 16, 2, 256
    hd = D // n_heads

    key = jax.random.PRNGKey(0)
    kx, kq, kk, kv, ko = jax.random.split(key, 5)
    x = jax.random.normal(kx, (B, S, D), jnp.float32)
    init = lambda k: jax.random.normal(k, (D, D), jnp.float32) * 0.05
    wq, wk, wv, wo = init(kq), init(kk), init(kv), init(ko)

    # rotary tables (llama precompute_freqs_cis, theta = 10000)
    inv_freq = 1.0 / (10000.0 ** (np.arange(0, hd, 2, dtype=np.float32) / hd))
    angles = np.outer(np.arange(S, dtype=np.float32), inv_freq)      # (S, hd//2)
    cos_hd = jnp.asarray(np.cos(angles), jnp.float32)
    sin_hd = jnp.asarray(np.sin(angles), jnp.float32)

    out = attention_pallas(x, wq, wk, wv, wo, cos_hd, sin_hd, n_heads)
    out = jax.block_until_ready(out)

    ref = attention_reference(x, wq, wk, wv, wo, cos_hd, sin_hd, n_heads)
    assert out.shape == (B, S, D)
    # bf16 activations/weights on the MXU + approximate reciprocal vs f32 reference.
    np.testing.assert_allclose(np.asarray(out), np.asarray(ref), atol=3e-2, rtol=3e-2)
    print("KERNEL_OK")
</pallas_src>

<mosaic_0001>
module attributes {stable_mosaic.version = 11 : i64} {
  func.func @_attention_kernel(%arg0: i32, %arg1: memref<1x16x256xbf16, #tpu.memory_space<vmem>>, %arg2: memref<256x768xbf16, #tpu.memory_space<vmem>>, %arg3: memref<256x256xbf16, #tpu.memory_space<vmem>>, %arg4: memref<4x16x128xf32, #tpu.memory_space<vmem>>, %arg5: memref<1x16x256xf32, #tpu.memory_space<vmem>>) attributes {dimension_semantics = [#tpu.dimension_semantics<parallel>], iteration_bounds = array<i64: 2>, scalar_prefetch = 0 : i64, scratch_operands = 0 : i64, tpu.core_type = #tpu.core_type<tc>, window_params = [{transform_indices = @transform_0, window_bounds = array<i64: 1, 16, 256>}, {pipeline_mode = #tpu.pipeline_mode<synchronous>, transform_indices = @transform_1, window_bounds = array<i64: 256, 768>}, {pipeline_mode = #tpu.pipeline_mode<synchronous>, transform_indices = @transform_2, window_bounds = array<i64: 256, 256>}, {pipeline_mode = #tpu.pipeline_mode<synchronous>, transform_indices = @transform_3, window_bounds = array<i64: 4, 16, 128>}, {transform_indices = @transform_4, window_bounds = array<i64: 1, 16, 256>}]} {
    %c0 = arith.constant 0 : index
    %c0_0 = arith.constant 0 : index
    %c0_1 = arith.constant 0 : index
    %0 = vector.load %arg1[%c0, %c0_0, %c0_1] : memref<1x16x256xbf16, #tpu.memory_space<vmem>>, vector<1x16x256xbf16>
    %1 = vector.shape_cast %0 : vector<1x16x256xbf16> to vector<16x256xbf16>
    %c0_2 = arith.constant 0 : index
    %c0_3 = arith.constant 0 : index
    %2 = vector.load %arg2[%c0_2, %c0_3] : memref<256x768xbf16, #tpu.memory_space<vmem>>, vector<256x768xbf16>
    %cst = arith.constant dense<0.000000e+00> : vector<16x768xf32>
    %3 = tpu.matmul %1, %2, %cst {dimension_numbers = #tpu.dot_dimension_numbers<[1], [0], [0], [1], [0, 0, 1, 1], [], []>} : vector<16x256xbf16>, vector<256x768xbf16>, vector<16x768xf32> -> vector<16x768xf32>
    %4 = vector.extract_strided_slice %3 {offsets = [0, 0], sizes = [16, 256], strides = [1, 1]} : vector<16x768xf32> to vector<16x256xf32>
    %5 = vector.extract_strided_slice %3 {offsets = [0, 256], sizes = [16, 256], strides = [1, 1]} : vector<16x768xf32> to vector<16x256xf32>
    %6 = vector.extract_strided_slice %3 {offsets = [0, 512], sizes = [16, 256], strides = [1, 1]} : vector<16x768xf32> to vector<16x256xf32>
    %7 = vector.extract_strided_slice %4 {offsets = [0, 0], sizes = [16, 128], strides = [1, 1]} : vector<16x256xf32> to vector<16x128xf32>
    %8 = vector.extract_strided_slice %4 {offsets = [0, 128], sizes = [16, 128], strides = [1, 1]} : vector<16x256xf32> to vector<16x128xf32>
    %9 = vector.shape_cast %7 : vector<16x128xf32> to vector<1x16x128xf32>
    %10 = vector.shape_cast %8 : vector<16x128xf32> to vector<1x16x128xf32>
    %11 = tpu.concatenate %9, %10 in 0 : vector<1x16x128xf32>, vector<1x16x128xf32> -> vector<2x16x128xf32>
    %12 = vector.extract_strided_slice %5 {offsets = [0, 0], sizes = [16, 128], strides = [1, 1]} : vector<16x256xf32> to vector<16x128xf32>
    %13 = vector.extract_strided_slice %5 {offsets = [0, 128], sizes = [16, 128], strides = [1, 1]} : vector<16x256xf32> to vector<16x128xf32>
    %14 = vector.shape_cast %12 : vector<16x128xf32> to vector<1x16x128xf32>
    %15 = vector.shape_cast %13 : vector<16x128xf32> to vector<1x16x128xf32>
    %16 = tpu.concatenate %14, %15 in 0 : vector<1x16x128xf32>, vector<1x16x128xf32> -> vector<2x16x128xf32>
    %17 = vector.extract_strided_slice %6 {offsets = [0, 0], sizes = [16, 128], strides = [1, 1]} : vector<16x256xf32> to vector<16x128xf32>
    %18 = vector.extract_strided_slice %6 {offsets = [0, 128], sizes = [16, 128], strides = [1, 1]} : vector<16x256xf32> to vector<16x128xf32>
    %19 = vector.shape_cast %17 : vector<16x128xf32> to vector<1x16x128xf32>
    %20 = vector.shape_cast %18 : vector<16x128xf32> to vector<1x16x128xf32>
    %21 = tpu.concatenate %19, %20 in 0 : vector<1x16x128xf32>, vector<1x16x128xf32> -> vector<2x16x128xf32>
    %c0_4 = arith.constant 0 : index
    %c0_5 = arith.constant 0 : index
    %c0_6 = arith.constant 0 : index
    %22 = vector.load %arg4[%c0_4, %c0_5, %c0_6] : memref<4x16x128xf32, #tpu.memory_space<vmem>>, vector<1x16x128xf32>
    %23 = vector.shape_cast %22 : vector<1x16x128xf32> to vector<16x128xf32>
    %24 = vector.shape_cast %23 : vector<16x128xf32> to vector<1x16x128xf32>
    %c1 = arith.constant 1 : index
    %c0_7 = arith.constant 0 : index
    %c0_8 = arith.constant 0 : index
    %25 = vector.load %arg4[%c1, %c0_7, %c0_8] : memref<4x16x128xf32, #tpu.memory_space<vmem>>, vector<1x16x128xf32>
    %26 = vector.shape_cast %25 : vector<1x16x128xf32> to vector<16x128xf32>
    %27 = vector.shape_cast %26 : vector<16x128xf32> to vector<1x16x128xf32>
    %c2 = arith.constant 2 : index
    %c0_9 = arith.constant 0 : index
    %c0_10 = arith.constant 0 : index
    %28 = vector.load %arg4[%c2, %c0_9, %c0_10] : memref<4x16x128xf32, #tpu.memory_space<vmem>>, vector<1x16x128xf32>
    %29 = vector.shape_cast %28 : vector<1x16x128xf32> to vector<16x128xf32>
    %30 = vector.shape_cast %29 : vector<16x128xf32> to vector<1x16x128xf32>
    %c3 = arith.constant 3 : index
    %c0_11 = arith.constant 0 : index
    %c0_12 = arith.constant 0 : index
    %31 = vector.load %arg4[%c3, %c0_11, %c0_12] : memref<4x16x128xf32, #tpu.memory_space<vmem>>, vector<1x16x128xf32>
    %32 = vector.shape_cast %31 : vector<1x16x128xf32> to vector<16x128xf32>
    %33 = vector.shape_cast %32 : vector<16x128xf32> to vector<1x16x128xf32>
    %34 = vector.broadcast %24 : vector<1x16x128xf32> to vector<2x16x128xf32>
    %35 = arith.mulf %11, %34 : vector<2x16x128xf32>
    %c64_i32 = arith.constant 64 : i32
    %36 = tpu.dynamic_rotate %11 by %c64_i32 dim 2 : vector<2x16x128xf32>, i32 -> vector<2x16x128xf32>
    %37 = vector.broadcast %27 : vector<1x16x128xf32> to vector<2x16x128xf32>
    %38 = arith.mulf %36, %37 : vector<2x16x128xf32>
    %39 = arith.addf %35, %38 : vector<2x16x128xf32>
    %40 = vector.broadcast %30 : vector<1x16x128xf32> to vector<2x16x128xf32>
    %41 = arith.mulf %16, %40 : vector<2x16x128xf32>
    %c64_i32_13 = arith.constant 64 : i32
    %42 = tpu.dynamic_rotate %16 by %c64_i32_13 dim 2 : vector<2x16x128xf32>, i32 -> vector<2x16x128xf32>
    %43 = vector.broadcast %33 : vector<1x16x128xf32> to vector<2x16x128xf32>
    %44 = arith.mulf %42, %43 : vector<2x16x128xf32>
    %45 = arith.addf %41, %44 : vector<2x16x128xf32>
    %46 = arith.truncf %39 : vector<2x16x128xf32> to vector<2x16x128xbf16>
    %47 = arith.truncf %45 : vector<2x16x128xf32> to vector<2x16x128xbf16>
    "tpu.trace_start"() <{level = 10 : i32, message = "hqd,hkd->hqk"}> : () -> ()
    %cst_14 = arith.constant dense<0.000000e+00> : vector<2x16x16xf32>
    %48 = tpu.matmul %46, %47, %cst_14 {dimension_numbers = #tpu.dot_dimension_numbers<[2], [2], [1], [1], [0, 0, 0, 1, 1, 1], [0], [0]>} : vector<2x16x128xbf16>, vector<2x16x128xbf16>, vector<2x16x16xf32> -> vector<2x16x16xf32>
    "tpu.trace_stop"() : () -> ()
    %49 = tpu.iota {dimensions = array<i32: 0>} : vector<16x16xi32>
    %50 = tpu.iota {dimensions = array<i32: 1>} : vector<16x16xi32>
    %51 = arith.cmpi sle, %50, %49 : vector<16x16xi32>
    %52 = vector.shape_cast %51 : vector<16x16xi1> to vector<1x16x16xi1>
    %cst_15 = arith.constant -2.38197633E+38 : f32
    %53 = vector.shape_cast %52 : vector<1x16x16xi1> to vector<1x16x16xi1>
    %54 = vector.broadcast %53 : vector<1x16x16xi1> to vector<2x16x16xi1>
    %55 = vector.broadcast %cst_15 : f32 to vector<2x16x16xf32>
    %56 = arith.select %54, %48, %55 : vector<2x16x16xi1>, vector<2x16x16xf32>
    %cst_16 = arith.constant dense<0xFF800000> : vector<2x16xf32>
    %57 = vector.multi_reduction <maximumf>, %56, %cst_16 [2] : vector<2x16x16xf32> to vector<2x16xf32>
    %58 = vector.shape_cast %57 : vector<2x16xf32> to vector<2x16x1xf32>
    %59 = vector.broadcast %58 : vector<2x16x1xf32> to vector<2x16x16xf32>
    %60 = arith.subf %56, %59 : vector<2x16x16xf32>
    %61 = math.exp %60 : vector<2x16x16xf32>
    %cst_17 = arith.constant dense<0.000000e+00> : vector<2x16xf32>
    %62 = vector.multi_reduction <add>, %61, %cst_17 [2] : vector<2x16x16xf32> to vector<2x16xf32>
    %63 = vector.shape_cast %62 : vector<2x16xf32> to vector<2x16x1xf32>
    %64 = arith.truncf %61 : vector<2x16x16xf32> to vector<2x16x16xbf16>
    %65 = arith.truncf %21 : vector<2x16x128xf32> to vector<2x16x128xbf16>
    "tpu.trace_start"() <{level = 10 : i32, message = "hqk,hkd->hqd"}> : () -> ()
    %cst_18 = arith.constant dense<0.000000e+00> : vector<2x16x128xf32>
    %66 = tpu.matmul %64, %65, %cst_18 {dimension_numbers = #tpu.dot_dimension_numbers<[2], [1], [1], [2], [0, 0, 0, 1, 1, 2], [0], [0]>} : vector<2x16x16xbf16>, vector<2x16x128xbf16>, vector<2x16x128xf32> -> vector<2x16x128xf32>
    "tpu.trace_stop"() : () -> ()
    %67 = tpu.reciprocal %63 {approx = true} : vector<2x16x1xf32> -> vector<2x16x1xf32>
    %68 = vector.broadcast %67 : vector<2x16x1xf32> to vector<2x16x128xf32>
    %69 = arith.mulf %66, %68 : vector<2x16x128xf32>
    %70 = vector.extract_strided_slice %69 {offsets = [0, 0, 0], sizes = [1, 16, 128], strides = [1, 1, 1]} : vector<2x16x128xf32> to vector<1x16x128xf32>
    %71 = vector.shape_cast %70 : vector<1x16x128xf32> to vector<16x128xf32>
    %72 = vector.extract_strided_slice %69 {offsets = [1, 0, 0], sizes = [1, 16, 128], strides = [1, 1, 1]} : vector<2x16x128xf32> to vector<1x16x128xf32>
    %73 = vector.shape_cast %72 : vector<1x16x128xf32> to vector<16x128xf32>
    %74 = tpu.concatenate %71, %73 in 1 : vector<16x128xf32>, vector<16x128xf32> -> vector<16x256xf32>
    %75 = arith.truncf %74 : vector<16x256xf32> to vector<16x256xbf16>
    %c0_19 = arith.constant 0 : index
    %c0_20 = arith.constant 0 : index
    %76 = vector.load %arg3[%c0_19, %c0_20] : memref<256x256xbf16, #tpu.memory_space<vmem>>, vector<256x256xbf16>
    %cst_21 = arith.constant dense<0.000000e+00> : vector<16x256xf32>
    %77 = tpu.matmul %75, %76, %cst_21 {dimension_numbers = #tpu.dot_dimension_numbers<[1], [0], [0], [1], [0, 0, 1, 1], [], []>} : vector<16x256xbf16>, vector<256x256xbf16>, vector<16x256xf32> -> vector<16x256xf32>
    %c0_22 = arith.constant 0 : index
    %c0_23 = arith.constant 0 : index
    %c0_24 = arith.constant 0 : index
    %78 = vector.load %arg5[%c0_22, %c0_23, %c0_24] : memref<1x16x256xf32, #tpu.memory_space<vmem>>, vector<1x16x256xf32>
    %79 = vector.shape_cast %78 : vector<1x16x256xf32> to vector<16x256xf32>
    %80 = vector.shape_cast %77 : vector<16x256xf32> to vector<1x16x256xf32>
    tpu.vector_store %arg5[%c0_22, %c0_23, %c0_24], %80 {strides = array<i32>} : memref<1x16x256xf32, #tpu.memory_space<vmem>>, vector<1x16x256xf32>,
    return
  }
  func.func @transform_0(%arg0: i32) -> (i32, i32, i32) {
    %c0_i32 = arith.constant 0 : i32
    %c0_i32_0 = arith.constant 0 : i32
    %c0_i32_1 = arith.constant 0 : i32
    return %arg0, %c0_i32, %c0_i32_0 : i32, i32, i32
  }
  func.func @transform_1(%arg0: i32) -> (i32, i32) {
    %c0_i32 = arith.constant 0 : i32
    %c0_i32_0 = arith.constant 0 : i32
    %c0_i32_1 = arith.constant 0 : i32
    return %c0_i32, %c0_i32_0 : i32, i32
  }
  func.func @transform_2(%arg0: i32) -> (i32, i32) {
    %c0_i32 = arith.constant 0 : i32
    %c0_i32_0 = arith.constant 0 : i32
    %c0_i32_1 = arith.constant 0 : i32
    return %c0_i32, %c0_i32_0 : i32, i32
  }
  func.func @transform_3(%arg0: i32) -> (i32, i32, i32) {
    %c0_i32 = arith.constant 0 : i32
    %c0_i32_0 = arith.constant 0 : i32
    %c0_i32_1 = arith.constant 0 : i32
    %c0_i32_2 = arith.constant 0 : i32
    return %c0_i32, %c0_i32_0, %c0_i32_1 : i32, i32, i32
  }
  func.func @transform_4(%arg0: i32) -> (i32, i32, i32) {
    %c0_i32 = arith.constant 0 : i32
    %c0_i32_0 = arith.constant 0 : i32
    %c0_i32_1 = arith.constant 0 : i32
    return %arg0, %c0_i32, %c0_i32_0 : i32, i32, i32
  }
}

</mosaic_0001>

<llo_original>
// kernel: tpu_custom_call.1
$region0: #{tpu_custom_call.1}
  #allocation0 [shape = 'u32[]', space=smem, size = 0x4, offset = 0x4, fixed_abs, tag = 'smem constant byte address 0x4 - core index']
  #allocation1 [shape = 'u32[144,128]{1,0:T(1,128)}', space=vmem, size = 0x12000, scoped, tag = 'internal scratch']
  %s0 = inlined_call_operand.hbm [shape: bf16[2,16,256], index: 0, kind: input, shape index: {}]
  %s1 = inlined_call_operand.hbm [shape: bf16[256,768], index: 1, kind: input, shape index: {}]
  %s2 = inlined_call_operand.hbm [shape: bf16[256,256], index: 2, kind: input, shape index: {}]
  %s3 = inlined_call_operand.hbm [shape: f32[4,16,128], index: 3, kind: input, shape index: {}]
  %s4 = inlined_call_operand.hbm [shape: f32[2,16,256], index: 4, kind: output, shape index: {}]
  %s5 = sld [smem:[#allocation0]]
  $region65: #{tpu_custom_call.1} parent=0
    _
  %s7 = ssub.s32 1, %s5
  %s8 = scalar_select 0, %s7, %s5
  $region1: #{tpu_custom_call.1} parent=0
    #allocation2 [shape = 'u8[16384]{0}', space=vmem, size = 0x4000, scoped, tag = 'input window, operand 0']
    #allocation3 [shape = 's32[2]{0}', space=sflag, size = 0x8, scoped, tag = 'scoped memory for tpu_custom_call.1']
    #allocation4 [shape = 's32[2]{0}', space=sflag, size = 0x8, scoped, tag = 'scoped memory for tpu_custom_call.1']
    #allocation5 [shape = 'u8[393216]{0}', space=vmem, size = 0x60000, scoped, tag = 'input window, operand 1, single buffered']
    #allocation6 [shape = 's32[1]{0}', space=sflag, size = 0x4, scoped, tag = 'scoped memory for tpu_custom_call.1']
    #allocation7 [shape = 'u8[131072]{0}', space=vmem, size = 0x20000, scoped, tag = 'input window, operand 2, single buffered']
    #allocation8 [shape = 'u8[32768]{0}', space=vmem, size = 0x8000, scoped, tag = 'input window, operand 3, single buffered']
    #allocation9 [shape = 's32[1]{0}', space=sflag, size = 0x4, scoped, tag = 'scoped memory for tpu_custom_call.1']
    #allocation10 [shape = 'u8[32768]{0}', space=vmem, size = 0x8000, scoped, tag = 'output window, operand 0']
    %9 = vsyncpa [#allocation3], 0
    %s10 = scalar_lea.sflag [#allocation3], 1
    %11 = vsyncpa %s10, 0
    %12 = vsyncpa [#allocation6], 0
    %13 = vsyncpa [#allocation9], 0
    %14 = vsyncpa [#allocation4], 0
    %s15 = scalar_lea.sflag [#allocation4], 1
    %16 = vsyncpa %s15, 0
    loop: start=0, step=1, limit=4
    $region2: #{tpu_custom_call.1} parent=1 // loop_pre_header
      _
    $region3: #{tpu_custom_call.1} parent=1 // loop_header
      %s18 = sphi 0, %s22
      %p19 = scmp.ge.s32.totalorder %s18, 4
      %s28 = sphi 0, %s30
      %s31 = sphi 0, %s28
      %s32 = sphi 0, %s31
      %s48 = sphi 0, %s32
      %s52 = sphi 0, %s52
      %s54 = sphi 0, %s52
      %s55 = sphi 0, %s54
      %s69 = sphi 0, %s55
      %s73 = sphi 0, %s73
      %s75 = sphi 0, %s73
      %s76 = sphi 0, %s75
      %s90 = sphi 0, %s76
      %s94 = sphi 0, %s94
      %s96 = sphi 0, %s94
      %s97 = sphi 0, %s96
      %s111 = sphi 0, %s97
      %s117 = sphi 0, %s119
      %s120 = sphi 0, %s117
      %s121 = sphi 0, %s120
      %s137 = sphi 0, %s121
    $region4: #{tpu_custom_call.1} parent=1 // loop_header_branch
      %21 = sbr.rel (%p19) target = $region8
    $region5: #{tpu_custom_call.1} parent=1 // loop_body
      %s23 = ssub.s32 %s18, 1
      %s24 = ssub.s32 %s18, 2
      %s25 = sadd.s32 %s18, 1
      %s26 = ssub.s32 %s18, %s25
      %p27 = scmp.eq.s32.totalorder %s26, 0
      %s29 = sadd.s32 %s28, 1
      %s30 = scalar_select %p27, %s28, %s29
      %p33 = pneg %p27
      %p34 = scmp.eq.s32.totalorder %s18, 1
      %p35 = por %p33, %p34
      %p36 = scmp.ne.s32.totalorder %s28, %s31
      %p37 = scmp.eq.s32.totalorder %s18, 0
      %p38 = por %p36, %p37
      %p39 = scmp.ne.s32.totalorder %s28, %s31
      %p40 = scmp.eq.s32.totalorder %s23, 1
      %p41 = por %p39, %p40
      %p42 = scmp.ne.s32.totalorder %s31, %s32
      %p43 = scmp.eq.s32.totalorder %s23, 0
      %p44 = por %p42, %p43
      %p45 = scmp.ne.s32.totalorder %s31, %s32
      %p46 = scmp.eq.s32.totalorder %s24, 1
      %p47 = por %p45, %p46
      %p49 = scmp.ne.s32.totalorder %s32, %s48
      %p50 = scmp.eq.s32.totalorder %s24, 0
      %p51 = por %p49, %p50
      %s53 = sadd.s32 %s52, 1
      %p56 = scmp.eq.s32.totalorder %s18, 1
      %p57 = scmp.ne.s32.totalorder %s52, %s54
      %p58 = scmp.eq.s32.totalorder %s18, 0
      %p59 = por %p57, %p58
      %p60 = scmp.ne.s32.totalorder %s52, %s54
      %p61 = scmp.eq.s32.totalorder %s23, 1
      %p62 = por %p60, %p61
      %p63 = scmp.ne.s32.totalorder %s54, %s55
      %p64 = scmp.eq.s32.totalorder %s23, 0
      %p65 = por %p63, %p64
      %p66 = scmp.ne.s32.totalorder %s54, %s55
      %p67 = scmp.eq.s32.totalorder %s24, 1
      %p68 = por %p66, %p67
      %p70 = scmp.ne.s32.totalorder %s55, %s69
      %p71 = scmp.eq.s32.totalorder %s24, 0
      %p72 = por %p70, %p71
      %s74 = sadd.s32 %s73, 1
      %p77 = scmp.eq.s32.totalorder %s18, 1
      %p78 = scmp.ne.s32.totalorder %s73, %s75
      %p79 = scmp.eq.s32.totalorder %s18, 0
      %p80 = por %p78, %p79
      %p81 = scmp.ne.s32.totalorder %s73, %s75
      %p82 = scmp.eq.s32.totalorder %s23, 1
      %p83 = por %p81, %p82
      %p84 = scmp.ne.s32.totalorder %s75, %s76
      %p85 = scmp.eq.s32.totalorder %s23, 0
      %p86 = por %p84, %p85
      %p87 = scmp.ne.s32.totalorder %s75, %s76
      %p88 = scmp.eq.s32.totalorder %s24, 1
      %p89 = por %p87, %p88
      %p91 = scmp.ne.s32.totalorder %s76, %s90
      %p92 = scmp.eq.s32.totalorder %s24, 0
      %p93 = por %p91, %p92
      %s95 = sadd.s32 %s94, 1
      %p98 = scmp.eq.s32.totalorder %s18, 1
      %p99 = scmp.ne.s32.totalorder %s94, %s96
      %p100 = scmp.eq.s32.totalorder %s18, 0
      %p101 = por %p99, %p100
      %p102 = scmp.ne.s32.totalorder %s94, %s96
      %p103 = scmp.eq.s32.totalorder %s23, 1
      %p104 = por %p102, %p103
      %p105 = scmp.ne.s32.totalorder %s96, %s97
      %p106 = scmp.eq.s32.totalorder %s23, 0
      %p107 = por %p105, %p106
      %p108 = scmp.ne.s32.totalorder %s96, %s97
      %p109 = scmp.eq.s32.totalorder %s24, 1
      %p110 = por %p108, %p109
      %p112 = scmp.ne.s32.totalorder %s97, %s111
      %p113 = scmp.eq.s32.totalorder %s24, 0
      %p114 = por %p112, %p113
      %s115 = ssub.s32 %s18, %s25
      %p116 = scmp.eq.s32.totalorder %s115, 0
      %s118 = sadd.s32 %s117, 1
      %s119 = scalar_select %p116, %s117, %s118
      %p122 = pneg %p116
      %p123 = scmp.eq.s32.totalorder %s18, 1
      %p124 = por %p122, %p123
      %p125 = scmp.ne.s32.totalorder %s117, %s120
      %p126 = scmp.eq.s32.totalorder %s18, 0
      %p127 = por %p125, %p126
      %p128 = scmp.ne.s32.totalorder %s117, %s120
      %p129 = scmp.eq.s32.totalorder %s23, 1
      %p130 = por %p128, %p129
      %p131 = scmp.ne.s32.totalorder %s120, %s121
      %p132 = scmp.eq.s32.totalorder %s23, 0
      %p133 = por %p131, %p132
      %p134 = scmp.ne.s32.totalorder %s120, %s121
      %p135 = scmp.eq.s32.totalorder %s24, 1
      %p136 = por %p134, %p135
      %p138 = scmp.ne.s32.totalorder %s121, %s137
      %p139 = scmp.eq.s32.totalorder %s24, 0
      %p140 = por %p138, %p139
      %p141 = scmp.le.s32.totalorder 1, %s18
      %p142 = scmp.lt.s32.totalorder %s18, 3
      %p143 = pnand %p141, %p142
      %p144 = pneg %p143
      // Predicated region
      $region9: #{tpu_custom_call.1} parent=5 // pred_check
        _
      $region10: #{tpu_custom_call.1} parent=5 // pred_check_branch
        %146 = sbr.rel (%p143) target = $region12
      $region11: #{tpu_custom_call.1} parent=5 // pred_region
        %s147 = ssub.s32 %s18, 1
        // Predicated region
        $region13: #{tpu_custom_call.1} parent=11 // pred_check
          %p148 = pneg %p65
        $region14: #{tpu_custom_call.1} parent=11 // pred_check_branch
          %150 = sbr.rel (%p148) target = $region16
        $region15: #{tpu_custom_call.1} parent=11 // pred_region
          %s152 = ssub.s32 12288, 12288
          %153 = vsyncadd [#allocation6], %s152
          %s154 = sshll.u32 [#allocation5], 4
          %s155 = int_to_ptr.vmem [resolvable:$true] %s154
          %160 = dma.hbm_to_vmem [thread:$0]  %s1, 12288, %s155, [#allocation6], 384, 384, 24
        $region16: #{tpu_custom_call.1} parent=11 // pred_fallthru
          _
        // Predicated region
        $region17: #{tpu_custom_call.1} parent=11 // pred_check
          %p161 = pneg %p86
        $region18: #{tpu_custom_call.1} parent=11 // pred_check_branch
          %163 = sbr.rel (%p161) target = $region20
        $region19: #{tpu_custom_call.1} parent=11 // pred_region
          %s165 = ssub.s32 4096, 4096
          %166 = vsyncadd [#allocation6], %s165
          %s167 = sshll.u32 [#allocation7], 4
          %s168 = int_to_ptr.vmem [resolvable:$true] %s167
          %173 = dma.hbm_to_vmem [thread:$0]  %s2, 4096, %s168, [#allocation6], 128, 128, 8
        $region20: #{tpu_custom_call.1} parent=11 // pred_fallthru
          _
        // Predicated region
        $region21: #{tpu_custom_call.1} parent=11 // pred_check
          %p174 = pneg %p107
        $region22: #{tpu_custom_call.1} parent=11 // pred_check_branch
          %176 = sbr.rel (%p174) target = $region24
        $region23: #{tpu_custom_call.1} parent=11 // pred_region
          %s178 = ssub.s32 1024, 1024
          %179 = vsyncadd [#allocation9], %s178
          %s180 = sshll.u32 [#allocation8], 4
          %s181 = int_to_ptr.vmem [resolvable:$true] %s180
          %186 = dma.hbm_to_vmem [thread:$0]  %s3, 1024, %s181, [#allocation9], 128, 128, 8
        $region24: #{tpu_custom_call.1} parent=11 // pred_fallthru
          _
      $region12: #{tpu_custom_call.1} parent=5 // pred_fallthru
        _
      %p187 = scmp.lt.s32.totalorder %s18, 2
      // Predicated region
      $region25: #{tpu_custom_call.1} parent=5 // pred_check
        %p188 = pneg %p187
      $region26: #{tpu_custom_call.1} parent=5 // pred_check_branch
        %190 = sbr.rel (%p188) target = $region28
      $region27: #{tpu_custom_call.1} parent=5 // pred_region
        // Predicated region
        $region29: #{tpu_custom_call.1} parent=27 // pred_check
          %p191 = pneg %p38
        $region30: #{tpu_custom_call.1} parent=27 // pred_check_branch
          %193 = sbr.rel (%p191) target = $region32
        $region31: #{tpu_custom_call.1} parent=27 // pred_region
          %s194 = sand.u32 %s28, 1
          %s195 = scalar_lea.sflag [#allocation3], %s194
          %s196 = sand.u32 %s28, 1
          %s197 = smul.addr %s196, 16
          %s198 = scalar_lea.vmem [#allocation2], %s197
          %s200 = ssub.s32 256, 256
          %201 = vsyncadd %s195, %s200
          %s202 = smul.addr %s18, 4
          %s203 = smul.addr %s202, 64
          %s204 = scalar_lea.hbm %s0, %s203
          %s205 = sshll.u32 %s198, 4
          %s206 = int_to_ptr.vmem [resolvable:$true] %s205
          %211 = dma.hbm_to_vmem [thread:$0]  %s204, 256, %s206, %s195, 128, 128, 8
        $region32: #{tpu_custom_call.1} parent=27 // pred_fallthru
          _
      $region28: #{tpu_custom_call.1} parent=5 // pred_fallthru
        _
      %p212 = scmp.le.s32.totalorder 1, %s18
      %p213 = scmp.lt.s32.totalorder %s18, 3
      %p214 = pnand %p212, %p213
      %p215 = pneg %p214
      // Predicated region
      $region33: #{tpu_custom_call.1} parent=5 // pred_check
        _
      $region34: #{tpu_custom_call.1} parent=5 // pred_check_branch
        %217 = sbr.rel (%p214) target = $region36
      $region35: #{tpu_custom_call.1} parent=5 // pred_region
        %s218 = ssub.s32 %s18, 1
        %s219 = sand.u32 %s31, 1
        %s220 = scalar_lea.sflag [#allocation3], %s219
        %s221 = sand.u32 %s31, 1
        %s222 = smul.addr %s221, 16
        %s223 = scalar_lea.vmem [#allocation2], %s222
        // Predicated region
        $region37: #{tpu_custom_call.1} parent=35 // pred_check
          %p224 = pneg %p44
        $region38: #{tpu_custom_call.1} parent=35 // pred_check_branch
          %226 = sbr.rel (%p224) target = $region40
        $region39: #{tpu_custom_call.1} parent=35 // pred_region
          %227 = dma.done %s220, 256
        $region40: #{tpu_custom_call.1} parent=35 // pred_fallthru
          _
        // Predicated region
        $region41: #{tpu_custom_call.1} parent=35 // pred_check
          %p228 = pneg %p65
        $region42: #{tpu_custom_call.1} parent=35 // pred_check_branch
          %230 = sbr.rel (%p228) target = $region44
        $region43: #{tpu_custom_call.1} parent=35 // pred_region
          %231 = dma.done [#allocation6], 12288
        $region44: #{tpu_custom_call.1} parent=35 // pred_fallthru
          _
        // Predicated region
        $region45: #{tpu_custom_call.1} parent=35 // pred_check
          %p232 = pneg %p86
        $region46: #{tpu_custom_call.1} parent=35 // pred_check_branch
          %234 = sbr.rel (%p232) target = $region48
        $region47: #{tpu_custom_call.1} parent=35 // pred_region
          %235 = dma.done [#allocation6], 4096
        $region48: #{tpu_custom_call.1} parent=35 // pred_fallthru
          _
        // Predicated region
        $region49: #{tpu_custom_call.1} parent=35 // pred_check
          %p236 = pneg %p107
        $region50: #{tpu_custom_call.1} parent=35 // pred_check_branch
          %238 = sbr.rel (%p236) target = $region52
        $region51: #{tpu_custom_call.1} parent=35 // pred_region
          %239 = dma.done [#allocation9], 1024
        $region52: #{tpu_custom_call.1} parent=35 // pred_fallthru
          _
        %s240 = sand.u32 %s31, 1
        %s241 = scalar_lea.sflag [#allocation3], %s240
        %s242 = sand.u32 %s31, 1
        %s243 = smul.addr %s242, 16
        %s244 = scalar_lea.vmem [#allocation2], %s243
        %p245 = pneg %p44
        %p246 = pneg %p41
        %p247 = pneg %p65
        %p248 = pneg %p62
        %p249 = pneg %p86
        %p250 = pneg %p83
        %p251 = pneg %p107
        %p252 = pneg %p104
        %p253 = pneg %p133
        %p254 = pneg %p130
        %s255 = sand.u32 %s120, 1
        %s256 = scalar_lea.sflag [#allocation4], %s255
        %s257 = sand.u32 %s120, 1
        %s258 = smul.addr %s257, 32
        %s259 = scalar_lea.vmem [#allocation10], %s258
        %v261 = vld [vmem:[%s223] sm:$0xff]
        %v262 = vld [vmem:[%s223 + $0x8] sm:$0xff]
        %v263 = vld [vmem:[#allocation5] sm:$0xff]
        %v264 = vld [vmem:[#allocation5 + $0x8] sm:$0xff]
        %v265 = vld [vmem:[#allocation5 + $0x10] sm:$0xff]
        %v266 = vld [vmem:[#allocation5 + $0x18] sm:$0xff]
        %v267 = vld [vmem:[#allocation5 + $0x20] sm:$0xff]
        %v268 = vld [vmem:[#allocation5 + $0x28] sm:$0xff]
        %v269 = vld [vmem:[#allocation5 + $0x30] sm:$0xff]
        %v270 = vld [vmem:[#allocation5 + $0x38] sm:$0xff]
        %v271 = vld [vmem:[#allocation5 + $0x40] sm:$0xff]
        %v272 = vld [vmem:[#allocation5 + $0x48] sm:$0xff]
        %v273 = vld [vmem:[#allocation5 + $0x50] sm:$0xff]
        %v274 = vld [vmem:[#allocation5 + $0x58] sm:$0xff]
        %v275 = vld [vmem:[#allocation5 + $0x60] sm:$0xff]
        %v276 = vld [vmem:[#allocation5 + $0x68] sm:$0xff]
        %v277 = vld [vmem:[#allocation5 + $0x70] sm:$0xff]
        %v278 = vld [vmem:[#allocation5 + $0x78] sm:$0xff]
        %v279 = vld [vmem:[#allocation5 + $0x80] sm:$0xff]
        %v280 = vld [vmem:[#allocation5 + $0x88] sm:$0xff]
        %v281 = vld [vmem:[#allocation5 + $0x90] sm:$0xff]
        %v282 = vld [vmem:[#allocation5 + $0x98] sm:$0xff]
        %v283 = vld [vmem:[#allocation5 + $0xa0] sm:$0xff]
        %v284 = vld [vmem:[#allocation5 + $0xa8] sm:$0xff]
        %v285 = vld [vmem:[#allocation5 + $0xb0] sm:$0xff]
        %v286 = vld [vmem:[#allocation5 + $0xb8] sm:$0xff]
        %v287 = vld [vmem:[#allocation5 + $0xc0] sm:$0xff]
        %v288 = vld [vmem:[#allocation5 + $0xc8] sm:$0xff]
        %v289 = vld [vmem:[#allocation5 + $0xd0] sm:$0xff]
        %v290 = vld [vmem:[#allocation5 + $0xd8] sm:$0xff]
        %v291 = vld [vmem:[#allocation5 + $0xe0] sm:$0xff]
        %v292 = vld [vmem:[#allocation5 + $0xe8] sm:$0xff]
        %v293 = vld [vmem:[#allocation5 + $0xf0] sm:$0xff]
        %v294 = vld [vmem:[#allocation5 + $0xf8] sm:$0xff]
        %v295 = vld [vmem:[#allocation5 + $0x100] sm:$0xff]
        %v296 = vld [vmem:[#allocation5 + $0x108] sm:$0xff]
        %v297 = vld [vmem:[#allocation5 + $0x110] sm:$0xff]
        %v298 = vld [vmem:[#allocation5 + $0x118] sm:$0xff]
        %v299 = vld [vmem:[#allocation5 + $0x120] sm:$0xff]
        %v300 = vld [vmem:[#allocation5 + $0x128] sm:$0xff]
        %v301 = vld [vmem:[#allocation5 + $0x130] sm:$0xff]
        %v302 = vld [vmem:[#allocation5 + $0x138] sm:$0xff]
        %v303 = vld [vmem:[#allocation5 + $0x140] sm:$0xff]
        %v304 = vld [vmem:[#allocation5 + $0x148] sm:$0xff]
        %v305 = vld [vmem:[#allocation5 + $0x150] sm:$0xff]
        %v306 = vld [vmem:[#allocation5 + $0x158] sm:$0xff]
        %v307 = vld [vmem:[#allocation5 + $0x160] sm:$0xff]
        %v308 = vld [vmem:[#allocation5 + $0x168] sm:$0xff]
        %v309 = vld [vmem:[#allocation5 + $0x170] sm:$0xff]
        %v310 = vld [vmem:[#allocation5 + $0x178] sm:$0xff]
        %v311 = vld [vmem:[#allocation5 + $0x180] sm:$0xff]
        %v312 = vld [vmem:[#allocation5 + $0x188] sm:$0xff]
        %v313 = vld [vmem:[#allocation5 + $0x190] sm:$0xff]
        %v314 = vld [vmem:[#allocation5 + $0x198] sm:$0xff]
        %v315 = vld [vmem:[#allocation5 + $0x1a0] sm:$0xff]
        %v316 = vld [vmem:[#allocation5 + $0x1a8] sm:$0xff]
        %v317 = vld [vmem:[#allocation5 + $0x1b0] sm:$0xff]
        %v318 = vld [vmem:[#allocation5 + $0x1b8] sm:$0xff]
        %v319 = vld [vmem:[#allocation5 + $0x1c0] sm:$0xff]
        %v320 = vld [vmem:[#allocation5 + $0x1c8] sm:$0xff]
        %v321 = vld [vmem:[#allocation5 + $0x1d0] sm:$0xff]
        %v322 = vld [vmem:[#allocation5 + $0x1d8] sm:$0xff]
        %v323 = vld [vmem:[#allocation5 + $0x1e0] sm:$0xff]
        %v324 = vld [vmem:[#allocation5 + $0x1e8] sm:$0xff]
        %v325 = vld [vmem:[#allocation5 + $0x1f0] sm:$0xff]
        %v326 = vld [vmem:[#allocation5 + $0x1f8] sm:$0xff]
        %v327 = vld [vmem:[#allocation5 + $0x200] sm:$0xff]
        %v328 = vld [vmem:[#allocation5 + $0x208] sm:$0xff]
        %v329 = vld [vmem:[#allocation5 + $0x210] sm:$0xff]
        %v330 = vld [vmem:[#allocation5 + $0x218] sm:$0xff]
        %v331 = vld [vmem:[#allocation5 + $0x220] sm:$0xff]
        %v332 = vld [vmem:[#allocation5 + $0x228] sm:$0xff]
        %v333 = vld [vmem:[#allocation5 + $0x230] sm:$0xff]
        %v334 = vld [vmem:[#allocation5 + $0x238] sm:$0xff]
        %v335 = vld [vmem:[#allocation5 + $0x240] sm:$0xff]
        %v336 = vld [vmem:[#allocation5 + $0x248] sm:$0xff]
        %v337 = vld [vmem:[#allocation5 + $0x250] sm:$0xff]
        %v338 = vld [vmem:[#allocation5 + $0x258] sm:$0xff]
        %v339 = vld [vmem:[#allocation5 + $0x260] sm:$0xff]
        %v340 = vld [vmem:[#allocation5 + $0x268] sm:$0xff]
        %v341 = vld [vmem:[#allocation5 + $0x270] sm:$0xff]
        %v342 = vld [vmem:[#allocation5 + $0x278] sm:$0xff]
        %v343 = vld [vmem:[#allocation5 + $0x280] sm:$0xff]
        %v344 = vld [vmem:[#allocation5 + $0x288] sm:$0xff]
        %v345 = vld [vmem:[#allocation5 + $0x290] sm:$0xff]
        %v346 = vld [vmem:[#allocation5 + $0x298] sm:$0xff]
        %v347 = vld [vmem:[#allocation5 + $0x2a0] sm:$0xff]
        %v348 = vld [vmem:[#allocation5 + $0x2a8] sm:$0xff]
        %v349 = vld [vmem:[#allocation5 + $0x2b0] sm:$0xff]
        %v350 = vld [vmem:[#allocation5 + $0x2b8] sm:$0xff]
        %v351 = vld [vmem:[#allocation5 + $0x2c0] sm:$0xff]
        %v352 = vld [vmem:[#allocation5 + $0x2c8] sm:$0xff]
        %v353 = vld [vmem:[#allocation5 + $0x2d0] sm:$0xff]
        %v354 = vld [vmem:[#allocation5 + $0x2d8] sm:$0xff]
        %v355 = vld [vmem:[#allocation5 + $0x2e0] sm:$0xff]
        %v356 = vld [vmem:[#allocation5 + $0x2e8] sm:$0xff]
        %v357 = vld [vmem:[#allocation5 + $0x2f0] sm:$0xff]
        %v358 = vld [vmem:[#allocation5 + $0x2f8] sm:$0xff]
        %v361 = vunpack.c.l.b16 %v261
        %v362 = vunpack.c.h.b16 %v261
        %v363 = vunpack.c.l.b16 %v262
        %v364 = vunpack.c.h.b16 %v262
        %v365 = vpack.c.b16 %v363, %v361
        %v366 = vpack.c.b16 %v364, %v362
        %v465 = vunpack.c.l.b16 %v263
        %v466 = vunpack.c.h.b16 %v263
        %v467 = vunpack.c.l.b16 %v264
        %v468 = vunpack.c.h.b16 %v264
        %v469 = vunpack.c.l.b16 %v265
        %v470 = vunpack.c.h.b16 %v265
        %v471 = vunpack.c.l.b16 %v266
        %v472 = vunpack.c.h.b16 %v266
        %v473 = vunpack.c.l.b16 %v267
        %v474 = vunpack.c.h.b16 %v267
        %v475 = vunpack.c.l.b16 %v268
        %v476 = vunpack.c.h.b16 %v268
        %v477 = vunpack.c.l.b16 %v269
        %v478 = vunpack.c.h.b16 %v269
        %v479 = vunpack.c.l.b16 %v270
        %v480 = vunpack.c.h.b16 %v270
        %v481 = vunpack.c.l.b16 %v271
        %v482 = vunpack.c.h.b16 %v271
        %v483 = vunpack.c.l.b16 %v272
        %v484 = vunpack.c.h.b16 %v272
        %v485 = vunpack.c.l.b16 %v273
        %v486 = vunpack.c.h.b16 %v273
        %v487 = vunpack.c.l.b16 %v274
        %v488 = vunpack.c.h.b16 %v274
        %v489 = vunpack.c.l.b16 %v275
        %v490 = vunpack.c.h.b16 %v275
        %v491 = vunpack.c.l.b16 %v276
        %v492 = vunpack.c.h.b16 %v276
        %v493 = vunpack.c.l.b16 %v277
        %v494 = vunpack.c.h.b16 %v277
        %v495 = vunpack.c.l.b16 %v278
        %v496 = vunpack.c.h.b16 %v278
        %v497 = vunpack.c.l.b16 %v279
        %v498 = vunpack.c.h.b16 %v279
        %v499 = vunpack.c.l.b16 %v280
        %v500 = vunpack.c.h.b16 %v280
        %v501 = vunpack.c.l.b16 %v281
        %v502 = vunpack.c.h.b16 %v281
        %v503 = vunpack.c.l.b16 %v282
        %v504 = vunpack.c.h.b16 %v282
        %v505 = vunpack.c.l.b16 %v283
        %v506 = vunpack.c.h.b16 %v283
        %v507 = vunpack.c.l.b16 %v284
        %v508 = vunpack.c.h.b16 %v284
        %v509 = vunpack.c.l.b16 %v285
        %v510 = vunpack.c.h.b16 %v285
        %v511 = vunpack.c.l.b16 %v286
        %v512 = vunpack.c.h.b16 %v286
        %v513 = vunpack.c.l.b16 %v287
        %v514 = vunpack.c.h.b16 %v287
        %v515 = vunpack.c.l.b16 %v288
        %v516 = vunpack.c.h.b16 %v288
        %v517 = vunpack.c.l.b16 %v289
        %v518 = vunpack.c.h.b16 %v289
        %v519 = vunpack.c.l.b16 %v290
        %v520 = vunpack.c.h.b16 %v290
        %v521 = vunpack.c.l.b16 %v291
        %v522 = vunpack.c.h.b16 %v291
        %v523 = vunpack.c.l.b16 %v292
        %v524 = vunpack.c.h.b16 %v292
        %v525 = vunpack.c.l.b16 %v293
        %v526 = vunpack.c.h.b16 %v293
        %v527 = vunpack.c.l.b16 %v294
        %v528 = vunpack.c.h.b16 %v294
        %v529 = vunpack.c.l.b16 %v295
        %v530 = vunpack.c.h.b16 %v295
        %v531 = vunpack.c.l.b16 %v296
        %v532 = vunpack.c.h.b16 %v296
        %v533 = vunpack.c.l.b16 %v297
        %v534 = vunpack.c.h.b16 %v297
        %v535 = vunpack.c.l.b16 %v298
        %v536 = vunpack.c.h.b16 %v298
        %v537 = vunpack.c.l.b16 %v299
        %v538 = vunpack.c.h.b16 %v299
        %v539 = vunpack.c.l.b16 %v300
        %v540 = vunpack.c.h.b16 %v300
        %v541 = vunpack.c.l.b16 %v301
        %v542 = vunpack.c.h.b16 %v301
        %v543 = vunpack.c.l.b16 %v302
        %v544 = vunpack.c.h.b16 %v302
        %v545 = vunpack.c.l.b16 %v303
        %v546 = vunpack.c.h.b16 %v303
        %v547 = vunpack.c.l.b16 %v304
        %v548 = vunpack.c.h.b16 %v304
        %v549 = vunpack.c.l.b16 %v305
        %v550 = vunpack.c.h.b16 %v305
        %v551 = vunpack.c.l.b16 %v306
        %v552 = vunpack.c.h.b16 %v306
        %v553 = vunpack.c.l.b16 %v307
        %v554 = vunpack.c.h.b16 %v307
        %v555 = vunpack.c.l.b16 %v308
        %v556 = vunpack.c.h.b16 %v308
        %v557 = vunpack.c.l.b16 %v309
        %v558 = vunpack.c.h.b16 %v309
        %v559 = vunpack.c.l.b16 %v310
        %v560 = vunpack.c.h.b16 %v310
        %v561 = vunpack.c.l.b16 %v311
        %v562 = vunpack.c.h.b16 %v311
        %v563 = vunpack.c.l.b16 %v312
        %v564 = vunpack.c.h.b16 %v312
        %v565 = vunpack.c.l.b16 %v313
        %v566 = vunpack.c.h.b16 %v313
        %v567 = vunpack.c.l.b16 %v314
        %v568 = vunpack.c.h.b16 %v314
        %v569 = vunpack.c.l.b16 %v315
        %v570 = vunpack.c.h.b16 %v315
        %v571 = vunpack.c.l.b16 %v316
        %v572 = vunpack.c.h.b16 %v316
        %v573 = vunpack.c.l.b16 %v317
        %v574 = vunpack.c.h.b16 %v317
        %v575 = vunpack.c.l.b16 %v318
        %v576 = vunpack.c.h.b16 %v318
        %v577 = vunpack.c.l.b16 %v319
        %v578 = vunpack.c.h.b16 %v319
        %v579 = vunpack.c.l.b16 %v320
        %v580 = vunpack.c.h.b16 %v320
        %v581 = vunpack.c.l.b16 %v321
        %v582 = vunpack.c.h.b16 %v321
        %v583 = vunpack.c.l.b16 %v322
        %v584 = vunpack.c.h.b16 %v322
        %v585 = vunpack.c.l.b16 %v323
        %v586 = vunpack.c.h.b16 %v323
        %v587 = vunpack.c.l.b16 %v324
        %v588 = vunpack.c.h.b16 %v324
        %v589 = vunpack.c.l.b16 %v325
        %v590 = vunpack.c.h.b16 %v325
        %v591 = vunpack.c.l.b16 %v326
        %v592 = vunpack.c.h.b16 %v326
        %v593 = vunpack.c.l.b16 %v327
        %v594 = vunpack.c.h.b16 %v327
        %v595 = vunpack.c.l.b16 %v328
        %v596 = vunpack.c.h.b16 %v328
        %v597 = vunpack.c.l.b16 %v329
        %v598 = vunpack.c.h.b16 %v329
        %v599 = vunpack.c.l.b16 %v330
        %v600 = vunpack.c.h.b16 %v330
        %v601 = vunpack.c.l.b16 %v331
        %v602 = vunpack.c.h.b16 %v331
        %v603 = vunpack.c.l.b16 %v332
        %v604 = vunpack.c.h.b16 %v332
        %v605 = vunpack.c.l.b16 %v333
        %v606 = vunpack.c.h.b16 %v333
        %v607 = vunpack.c.l.b16 %v334
        %v608 = vunpack.c.h.b16 %v334
        %v609 = vunpack.c.l.b16 %v335
        %v610 = vunpack.c.h.b16 %v335
        %v611 = vunpack.c.l.b16 %v336
        %v612 = vunpack.c.h.b16 %v336
        %v613 = vunpack.c.l.b16 %v337
        %v614 = vunpack.c.h.b16 %v337
        %v615 = vunpack.c.l.b16 %v338
        %v616 = vunpack.c.h.b16 %v338
        %v617 = vunpack.c.l.b16 %v339
        %v618 = vunpack.c.h.b16 %v339
        %v619 = vunpack.c.l.b16 %v340
        %v620 = vunpack.c.h.b16 %v340
        %v621 = vunpack.c.l.b16 %v341
        %v622 = vunpack.c.h.b16 %v341
        %v623 = vunpack.c.l.b16 %v342
        %v624 = vunpack.c.h.b16 %v342
        %v625 = vunpack.c.l.b16 %v343
        %v626 = vunpack.c.h.b16 %v343
        %v627 = vunpack.c.l.b16 %v344
        %v628 = vunpack.c.h.b16 %v344
        %v629 = vunpack.c.l.b16 %v345
        %v630 = vunpack.c.h.b16 %v345
        %v631 = vunpack.c.l.b16 %v346
        %v632 = vunpack.c.h.b16 %v346
        %v633 = vunpack.c.l.b16 %v347
        %v634 = vunpack.c.h.b16 %v347
        %v635 = vunpack.c.l.b16 %v348
        %v636 = vunpack.c.h.b16 %v348
        %v637 = vunpack.c.l.b16 %v349
        %v638 = vunpack.c.h.b16 %v349
        %v639 = vunpack.c.l.b16 %v350
        %v640 = vunpack.c.h.b16 %v350
        %v641 = vunpack.c.l.b16 %v351
        %v642 = vunpack.c.h.b16 %v351
        %v643 = vunpack.c.l.b16 %v352
        %v644 = vunpack.c.h.b16 %v352
        %v645 = vunpack.c.l.b16 %v353
        %v646 = vunpack.c.h.b16 %v353
        %v647 = vunpack.c.l.b16 %v354
        %v648 = vunpack.c.h.b16 %v354
        %v649 = vunpack.c.l.b16 %v355
        %v650 = vunpack.c.h.b16 %v355
        %v651 = vunpack.c.l.b16 %v356
        %v652 = vunpack.c.h.b16 %v356
        %v653 = vunpack.c.l.b16 %v357
        %v654 = vunpack.c.h.b16 %v357
        %v655 = vunpack.c.l.b16 %v358
        %v656 = vunpack.c.h.b16 %v358
        %v657 = vpack.c.b16 %v471, %v465
        %v658 = vpack.c.b16 %v472, %v466
        %v659 = vpack.c.b16 %v473, %v467
        %v660 = vpack.c.b16 %v474, %v468
        %v661 = vpack.c.b16 %v475, %v469
        %v662 = vpack.c.b16 %v476, %v470
        %v663 = vpack.c.b16 %v483, %v477
        %v664 = vpack.c.b16 %v484, %v478
        %v665 = vpack.c.b16 %v485, %v479
        %v666 = vpack.c.b16 %v486, %v480
        %v667 = vpack.c.b16 %v487, %v481
        %v668 = vpack.c.b16 %v488, %v482
        %v669 = vpack.c.b16 %v495, %v489
        %v670 = vpack.c.b16 %v496, %v490
        %v671 = vpack.c.b16 %v497, %v491
        %v672 = vpack.c.b16 %v498, %v492
        %v673 = vpack.c.b16 %v499, %v493
        %v674 = vpack.c.b16 %v500, %v494
        %v675 = vpack.c.b16 %v507, %v501
        %v676 = vpack.c.b16 %v508, %v502
        %v677 = vpack.c.b16 %v509, %v503
        %v678 = vpack.c.b16 %v510, %v504
        %v679 = vpack.c.b16 %v511, %v505
        %v680 = vpack.c.b16 %v512, %v506
        %v681 = vpack.c.b16 %v519, %v513
        %v682 = vpack.c.b16 %v520, %v514
        %v683 = vpack.c.b16 %v521, %v515
        %v684 = vpack.c.b16 %v522, %v516
        %v685 = vpack.c.b16 %v523, %v517
        %v686 = vpack.c.b16 %v524, %v518
        %v687 = vpack.c.b16 %v531, %v525
        %v688 = vpack.c.b16 %v532, %v526
        %v689 = vpack.c.b16 %v533, %v527
        %v690 = vpack.c.b16 %v534, %v528
        %v691 = vpack.c.b16 %v535, %v529
        %v692 = vpack.c.b16 %v536, %v530
        %v693 = vpack.c.b16 %v543, %v537
        %v694 = vpack.c.b16 %v544, %v538
        %v695 = vpack.c.b16 %v545, %v539
        %v696 = vpack.c.b16 %v546, %v540
        %v697 = vpack.c.b16 %v547, %v541
        %v698 = vpack.c.b16 %v548, %v542
        %v699 = vpack.c.b16 %v555, %v549
        %v700 = vpack.c.b16 %v556, %v550
        %v701 = vpack.c.b16 %v557, %v551
        %v702 = vpack.c.b16 %v558, %v552
        %v703 = vpack.c.b16 %v559, %v553
        %v704 = vpack.c.b16 %v560, %v554
        %v705 = vpack.c.b16 %v567, %v561
        %v706 = vpack.c.b16 %v568, %v562
        %v707 = vpack.c.b16 %v569, %v563
        %v708 = vpack.c.b16 %v570, %v564
        %v709 = vpack.c.b16 %v571, %v565
        %v710 = vpack.c.b16 %v572, %v566
        %v711 = vpack.c.b16 %v579, %v573
        %v712 = vpack.c.b16 %v580, %v574
        %v713 = vpack.c.b16 %v581, %v575
        %v714 = vpack.c.b16 %v582, %v576
        %v715 = vpack.c.b16 %v583, %v577
        %v716 = vpack.c.b16 %v584, %v578
        %v717 = vpack.c.b16 %v591, %v585
        %v718 = vpack.c.b16 %v592, %v586
        %v719 = vpack.c.b16 %v593, %v587
        %v720 = vpack.c.b16 %v594, %v588
        %v721 = vpack.c.b16 %v595, %v589
        %v722 = vpack.c.b16 %v596, %v590
        %v723 = vpack.c.b16 %v603, %v597
        %v724 = vpack.c.b16 %v604, %v598
        %v725 = vpack.c.b16 %v605, %v599
        %v726 = vpack.c.b16 %v606, %v600
        %v727 = vpack.c.b16 %v607, %v601
        %v728 = vpack.c.b16 %v608, %v602
        %v729 = vpack.c.b16 %v615, %v609
        %v730 = vpack.c.b16 %v616, %v610
        %v731 = vpack.c.b16 %v617, %v611
        %v732 = vpack.c.b16 %v618, %v612
        %v733 = vpack.c.b16 %v619, %v613
        %v734 = vpack.c.b16 %v620, %v614
        %v735 = vpack.c.b16 %v627, %v621
        %v736 = vpack.c.b16 %v628, %v622
        %v737 = vpack.c.b16 %v629, %v623
        %v738 = vpack.c.b16 %v630, %v624
        %v739 = vpack.c.b16 %v631, %v625
        %v740 = vpack.c.b16 %v632, %v626
        %v741 = vpack.c.b16 %v639, %v633
        %v742 = vpack.c.b16 %v640, %v634
        %v743 = vpack.c.b16 %v641, %v635
        %v744 = vpack.c.b16 %v642, %v636
        %v745 = vpack.c.b16 %v643, %v637
        %v746 = vpack.c.b16 %v644, %v638
        %v747 = vpack.c.b16 %v651, %v645
        %v748 = vpack.c.b16 %v652, %v646
        %v749 = vpack.c.b16 %v653, %v647
        %v750 = vpack.c.b16 %v654, %v648
        %v751 = vpack.c.b16 %v655, %v649
        %v752 = vpack.c.b16 %v656, %v650
        %849 = vmatprep.subr.bf16.mxu0 %v658
        %850 = vmatpush1.bf16.msra.mxu0 %v657
        %851 = vmatprep.subr.bf16.mxu0 %v664
        %852 = vmatpush1.bf16.msra.mxu0 %v663
        %853 = vmatprep.subr.bf16.mxu0 %v670
        %854 = vmatpush1.bf16.msra.mxu0 %v669
        %855 = vmatprep.subr.bf16.mxu0 %v676
        %856 = vmatpush1.bf16.msra.mxu0 %v675
        %857 = vmatprep.subr.bf16.mxu0 %v682
        %858 = vmatpush1.bf16.msra.mxu0 %v681
        %859 = vmatprep.subr.bf16.mxu0 %v688
        %860 = vmatpush1.bf16.msra.mxu0 %v687
        %861 = vmatprep.subr.bf16.mxu0 %v694
        %862 = vmatpush1.bf16.msra.mxu0 %v693
        %863 = vmatprep.subr.bf16.mxu0 %v700
        %864 = vmatpush1.bf16.msra.mxu0 %v699
        %865 = vmatprep.subr.bf16.mxu0 %v706
        %866 = vmatpush1.bf16.msra.mxu0 %v705
        %867 = vmatprep.subr.bf16.mxu0 %v712
        %868 = vmatpush1.bf16.msra.mxu0 %v711
        %869 = vmatprep.subr.bf16.mxu0 %v718
        %870 = vmatpush1.bf16.msra.mxu0 %v717
        %871 = vmatprep.subr.bf16.mxu0 %v724
        %872 = vmatpush1.bf16.msra.mxu0 %v723
        %873 = vmatprep.subr.bf16.mxu0 %v730
        %874 = vmatpush1.bf16.msra.mxu0 %v729
        %875 = vmatprep.subr.bf16.mxu0 %v736
        %876 = vmatpush1.bf16.msra.mxu0 %v735
        %877 = vmatprep.subr.bf16.mxu0 %v742
        %878 = vmatpush1.bf16.msra.mxu0 %v741
        %879 = vmatprep.subr.bf16.mxu0 %v748
        %880 = vmatpush1.bf16.msra.mxu0 %v747
        %881 = vmatprep.mubr.bf16.mxu0 %v366
        %882 = vmatmul.mubr.bf16.gmra.mrb[0].mxu0 %v365
        %v883 = vpop.f32.mrb[0].mxu0
        %v884 = vadd.f32 0.0, %v883
        %v885 = vpop.f32.mrb[0].mxu0
        %v886 = vadd.f32 0.0, %v885
        %v887 = vpop.f32.mrb[0].mxu0
        %v888 = vadd.f32 0.0, %v887
        %v889 = vpop.f32.mrb[0].mxu0
        %v890 = vadd.f32 0.0, %v889
        %891 = vdwg.mxu0
        %892 = vmatprep.subr.bf16.mxu0 %v660
        %893 = vmatpush1.bf16.msra.mxu0 %v659
        %894 = vmatprep.subr.bf16.mxu0 %v666
        %895 = vmatpush1.bf16.msra.mxu0 %v665
        %896 = vmatprep.subr.bf16.mxu0 %v672
        %897 = vmatpush1.bf16.msra.mxu0 %v671
        %898 = vmatprep.subr.bf16.mxu0 %v678
        %899 = vmatpush1.bf16.msra.mxu0 %v677
        %900 = vmatprep.subr.bf16.mxu0 %v684
        %901 = vmatpush1.bf16.msra.mxu0 %v683
        %902 = vmatprep.subr.bf16.mxu0 %v690
        %903 = vmatpush1.bf16.msra.mxu0 %v689
        %904 = vmatprep.subr.bf16.mxu0 %v696
        %905 = vmatpush1.bf16.msra.mxu0 %v695
        %906 = vmatprep.subr.bf16.mxu0 %v702
        %907 = vmatpush1.bf16.msra.mxu0 %v701
        %908 = vmatprep.subr.bf16.mxu0 %v708
        %909 = vmatpush1.bf16.msra.mxu0 %v707
        %910 = vmatprep.subr.bf16.mxu0 %v714
        %911 = vmatpush1.bf16.msra.mxu0 %v713
        %912 = vmatprep.subr.bf16.mxu0 %v720
        %913 = vmatpush1.bf16.msra.mxu0 %v719
        %914 = vmatprep.subr.bf16.mxu0 %v726
        %915 = vmatpush1.bf16.msra.mxu0 %v725
        %916 = vmatprep.subr.bf16.mxu0 %v732
        %917 = vmatpush1.bf16.msra.mxu0 %v731
        %918 = vmatprep.subr.bf16.mxu0 %v738
        %919 = vmatpush1.bf16.msra.mxu0 %v737
        %920 = vmatprep.subr.bf16.mxu0 %v744
        %921 = vmatpush1.bf16.msra.mxu0 %v743
        %922 = vmatprep.subr.bf16.mxu0 %v750
        %923 = vmatpush1.bf16.msra.mxu0 %v749
        %924 = vmatprep.mubr.bf16.mxu0 %v366
        %925 = vmatmul.mubr.bf16.gmra.mrb[0].mxu0 %v365
        %v926 = vpop.f32.mrb[0].mxu0
        %v927 = vadd.f32 0.0, %v926
        %v928 = vpop.f32.mrb[0].mxu0
        %v929 = vadd.f32 0.0, %v928
        %v930 = vpop.f32.mrb[0].mxu0
        %v931 = vadd.f32 0.0, %v930
        %v932 = vpop.f32.mrb[0].mxu0
        %v933 = vadd.f32 0.0, %v932
        %934 = vdwg.mxu0
        %935 = vmatprep.subr.bf16.mxu0 %v662
        %936 = vmatpush1.bf16.msra.mxu0 %v661
        %937 = vmatprep.subr.bf16.mxu0 %v668
        %938 = vmatpush1.bf16.msra.mxu0 %v667
        %939 = vmatprep.subr.bf16.mxu0 %v674
        %940 = vmatpush1.bf16.msra.mxu0 %v673
        %941 = vmatprep.subr.bf16.mxu0 %v680
        %942 = vmatpush1.bf16.msra.mxu0 %v679
        %943 = vmatprep.subr.bf16.mxu0 %v686
        %944 = vmatpush1.bf16.msra.mxu0 %v685
        %945 = vmatprep.subr.bf16.mxu0 %v692
        %946 = vmatpush1.bf16.msra.mxu0 %v691
        %947 = vmatprep.subr.bf16.mxu0 %v698
        %948 = vmatpush1.bf16.msra.mxu0 %v697
        %949 = vmatprep.subr.bf16.mxu0 %v704
        %950 = vmatpush1.bf16.msra.mxu0 %v703
        %951 = vmatprep.subr.bf16.mxu0 %v710
        %952 = vmatpush1.bf16.msra.mxu0 %v709
        %953 = vmatprep.subr.bf16.mxu0 %v716
        %954 = vmatpush1.bf16.msra.mxu0 %v715
        %955 = vmatprep.subr.bf16.mxu0 %v722
        %956 = vmatpush1.bf16.msra.mxu0 %v721
        %957 = vmatprep.subr.bf16.mxu0 %v728
        %958 = vmatpush1.bf16.msra.mxu0 %v727
        %959 = vmatprep.subr.bf16.mxu0 %v734
        %960 = vmatpush1.bf16.msra.mxu0 %v733
        %961 = vmatprep.subr.bf16.mxu0 %v740
        %962 = vmatpush1.bf16.msra.mxu0 %v739
        %963 = vmatprep.subr.bf16.mxu0 %v746
        %964 = vmatpush1.bf16.msra.mxu0 %v745
        %965 = vmatprep.subr.bf16.mxu0 %v752
        %966 = vmatpush1.bf16.msra.mxu0 %v751
        %967 = vmatprep.mubr.bf16.mxu0 %v366
        %968 = vmatmul.mubr.bf16.gmra.mrb[0].mxu0 %v365
        %v969 = vpop.f32.mrb[0].mxu0
        %v970 = vadd.f32 0.0, %v969
        %v971 = vpop.f32.mrb[0].mxu0
        %v972 = vadd.f32 0.0, %v971
        %v973 = vpop.f32.mrb[0].mxu0
        %v974 = vadd.f32 0.0, %v973
        %v975 = vpop.f32.mrb[0].mxu0
        %v976 = vadd.f32 0.0, %v975
        %977 = vdwg.mxu0
        %v978 = vld [vmem:[#allocation8] sm:$0xff]
        %v979 = vld [vmem:[#allocation8 + $0x8] sm:$0xff]
        %s980 = scalar_lea.vmem [#allocation8], 16
        %v981 = vld [vmem:[%s980] sm:$0xff]
        %v982 = vld [vmem:[%s980 + $0x8] sm:$0xff]
        %s983 = scalar_lea.vmem [#allocation8], 32
        %v984 = vld [vmem:[%s983] sm:$0xff]
        %v985 = vld [vmem:[%s983 + $0x8] sm:$0xff]
        %s986 = scalar_lea.vmem [#allocation8], 48
        %v987 = vld [vmem:[%s986] sm:$0xff]
        %v988 = vld [vmem:[%s986 + $0x8] sm:$0xff]
        %v989 = vmul.f32 %v884, %v978
        %v990 = vmul.f32 %v888, %v979
        %v991 = vmul.f32 %v886, %v978
        %v992 = vmul.f32 %v890, %v979
        %993 = vrot.lane.b32.xlu0 %v884, 64
        %v994 = vpop.permute.xlu0 %993
        %995 = vrot.lane.b32.xlu0 %v888, 64
        %v996 = vpop.permute.xlu0 %995
        %997 = vrot.lane.b32.xlu0 %v886, 64
        %v998 = vpop.permute.xlu0 %997
        %999 = vrot.lane.b32.xlu0 %v890, 64
        %v1000 = vpop.permute.xlu0 %999
        %v1001 = vmul.f32 %v994, %v981
        %v1002 = vmul.f32 %v996, %v982
        %v1003 = vmul.f32 %v998, %v981
        %v1004 = vmul.f32 %v1000, %v982
        %v1005 = vadd.f32 %v989, %v1001
        %v1006 = vadd.f32 %v990, %v1002
        %v1007 = vadd.f32 %v991, %v1003
        %v1008 = vadd.f32 %v992, %v1004
        %v1009 = vmul.f32 %v927, %v984
        %v1010 = vmul.f32 %v931, %v985
        %v1011 = vmul.f32 %v929, %v984
        %v1012 = vmul.f32 %v933, %v985
        %1013 = vrot.lane.b32.xlu0 %v927, 64
        %v1014 = vpop.permute.xlu0 %1013
        %1015 = vrot.lane.b32.xlu0 %v931, 64
        %v1016 = vpop.permute.xlu0 %1015
        %1017 = vrot.lane.b32.xlu0 %v929, 64
        %v1018 = vpop.permute.xlu0 %1017
        %1019 = vrot.lane.b32.xlu0 %v933, 64
        %v1020 = vpop.permute.xlu0 %1019
        %v1021 = vmul.f32 %v1014, %v987
        %v1022 = vmul.f32 %v1016, %v988
        %v1023 = vmul.f32 %v1018, %v987
        %v1024 = vmul.f32 %v1020, %v988
        %v1025 = vadd.f32 %v1009, %v1021
        %v1026 = vadd.f32 %v1010, %v1022
        %v1027 = vadd.f32 %v1011, %v1023
        %v1028 = vadd.f32 %v1012, %v1024
        %v1029 = vpack.c.bf16 %v1006, %v1005
        %v1030 = vpack.c.bf16 %v1008, %v1007
        %v1031 = vpack.c.bf16 %v1026, %v1025
        %v1032 = vpack.c.bf16 %v1028, %v1027
        %1033 = vmatprep.subr.bf16.mxu0 0
        %1034 = vmatpush1.bf16.xpose.msra.mxu0 %v1031
        %1035 = vmatprep.subr.bf16.mxu0 0
        %1036 = vmatpush1.bf16.xpose.msra.mxu0 0
        %1037 = vmatprep.subr.bf16.mxu0 0
        %1038 = vmatpush1.bf16.xpose.msra.mxu0 0
        %1039 = vmatprep.subr.bf16.mxu0 0
        %1040 = vmatpush1.bf16.xpose.msra.mxu0 0
        %1041 = vmatprep.subr.bf16.mxu0 0
        %1042 = vmatpush1.bf16.xpose.msra.mxu0 0
        %1043 = vmatprep.subr.bf16.mxu0 0
        %1044 = vmatpush1.bf16.xpose.msra.mxu0 0
        %1045 = vmatprep.subr.bf16.mxu0 0
        %1046 = vmatpush1.bf16.xpose.msra.mxu0 0
        %1047 = vmatprep.subr.bf16.mxu0 0
        %1048 = vmatpush1.bf16.xpose.msra.mxu0 0
        %1049 = vmatprep.subr.bf16.mxu0 0
        %1050 = vmatpush1.bf16.xpose.msra.mxu0 0
        %1051 = vmatprep.subr.bf16.mxu0 0
        %1052 = vmatpush1.bf16.xpose.msra.mxu0 0
        %1053 = vmatprep.subr.bf16.mxu0 0
        %1054 = vmatpush1.bf16.xpose.msra.mxu0 0
        %1055 = vmatprep.subr.bf16.mxu0 0
        %1056 = vmatpush1.bf16.xpose.msra.mxu0 0
        %1057 = vmatprep.subr.bf16.mxu0 0
        %1058 = vmatpush1.bf16.xpose.msra.mxu0 0
        %1059 = vmatprep.subr.bf16.mxu0 0
        %1060 = vmatpush1.bf16.xpose.msra.mxu0 0
        %1061 = vmatprep.subr.bf16.mxu0 0
        %1062 = vmatpush1.bf16.xpose.msra.mxu0 0
        %1063 = vmatprep.subr.bf16.mxu0 0
        %1064 = vmatpush1.bf16.xpose.msra.mxu0 0
        %1065 = vmatprep.mubr.bf16.mxu0 0
        %1066 = vmatmul.mubr.bf16.gmra.mrb[0].mxu0 %v1029
        %v1067 = vpop.f32.mrb[0].mxu0
        %v1068 = vadd.f32 0.0, %v1067
        %v1069 = vpop.f32.mrb[0].mxu0
        %v1070 = vpop.f32.mrb[0].mxu0
        %v1071 = vadd.f32 0.0, %v1070
        %v1072 = vpop.f32.mrb[0].mxu0
        %1073 = vdwg.mxu0
        %1074 = vmatprep.subr.bf16.mxu0 0
        %1075 = vmatpush1.bf16.xpose.msra.mxu0 %v1032
        %1076 = vmatprep.subr.bf16.mxu0 0
        %1077 = vmatpush1.bf16.xpose.msra.mxu0 0
        %1078 = vmatprep.subr.bf16.mxu0 0
        %1079 = vmatpush1.bf16.xpose.msra.mxu0 0
        %1080 = vmatprep.subr.bf16.mxu0 0
        %1081 = vmatpush1.bf16.xpose.msra.mxu0 0
        %1082 = vmatprep.subr.bf16.mxu0 0
        %1083 = vmatpush1.bf16.xpose.msra.mxu0 0
        %1084 = vmatprep.subr.bf16.mxu0 0
        %1085 = vmatpush1.bf16.xpose.msra.mxu0 0
        %1086 = vmatprep.subr.bf16.mxu0 0
        %1087 = vmatpush1.bf16.xpose.msra.mxu0 0
        %1088 = vmatprep.subr.bf16.mxu0 0
        %1089 = vmatpush1.bf16.xpose.msra.mxu0 0
        %1090 = vmatprep.subr.bf16.mxu0 0
        %1091 = vmatpush1.bf16.xpose.msra.mxu0 0
        %1092 = vmatprep.subr.bf16.mxu0 0
        %1093 = vmatpush1.bf16.xpose.msra.mxu0 0
        %1094 = vmatprep.subr.bf16.mxu0 0
        %1095 = vmatpush1.bf16.xpose.msra.mxu0 0
        %1096 = vmatprep.subr.bf16.mxu0 0
        %1097 = vmatpush1.bf16.xpose.msra.mxu0 0
        %1098 = vmatprep.subr.bf16.mxu0 0
        %1099 = vmatpush1.bf16.xpose.msra.mxu0 0
        %1100 = vmatprep.subr.bf16.mxu0 0
        %1101 = vmatpush1.bf16.xpose.msra.mxu0 0
        %1102 = vmatprep.subr.bf16.mxu0 0
        %1103 = vmatpush1.bf16.xpose.msra.mxu0 0
        %1104 = vmatprep.subr.bf16.mxu0 0
        %1105 = vmatpush1.bf16.xpose.msra.mxu0 0
        %1106 = vmatprep.mubr.bf16.mxu0 0
        %1107 = vmatmul.mubr.bf16.gmra.mrb[0].mxu0 %v1030
        %v1108 = vpop.f32.mrb[0].mxu0
        %v1109 = vadd.f32 0.0, %v1108
        %v1110 = vpop.f32.mrb[0].mxu0
        %v1111 = vpop.f32.mrb[0].mxu0
        %v1112 = vadd.f32 0.0, %v1111
        %v1113 = vpop.f32.mrb[0].mxu0
        %1114 = vdwg.mxu0
        %v1115 = vlaneseq
        %v1116 = vshrl.u32 %v1115, 7
        %v1117 = vadd.s32 %v1116, 8
        %v1118 = vlaneseq
        %v1119 = vand.u32 %v1118, 127
        %vm1120 = vcmp.le.s32.totalorder %v1119, %v1116
        %vm1121 = vcmp.le.s32.totalorder %v1119, %v1117
        %v1122 = vsel %vm1120, 1, 0
        %v1123 = vsel %vm1121, 1, 0
        %vm1124 = vcmp.eq.s32.totalorder %v1122, 1
        %vm1125 = vcmp.eq.s32.totalorder %v1123, 1
        %v1126 = vsel %vm1124, %v1068, -2.3819763e+38
        %v1127 = vsel %vm1125, %v1071, -2.3819763e+38
        %v1128 = vsel %vm1124, %v1109, -2.3819763e+38
        %v1129 = vsel %vm1125, %v1112, -2.3819763e+38
        %vm1130 = vcmask 130048
        %v1131 = vsel %vm1130, %v1126, -inf
        %1132 = vmax.xlane.f32.xlu0 %v1131
        %v1133 = vpop.xlane.xlu0 %1132
        %v1134 = vsel %vm1130, %v1127, -inf
        %1135 = vmax.xlane.f32.xlu0 %v1134
        %v1136 = vpop.xlane.xlu0 %1135
        %v1137 = vsel %vm1130, %v1128, -inf
        %1138 = vmax.xlane.f32.xlu0 %v1137
        %v1139 = vpop.xlane.xlu0 %1138
        %v1140 = vsel %vm1130, %v1129, -inf
        %1141 = vmax.xlane.f32.xlu0 %v1140
        %v1142 = vpop.xlane.xlu0 %1141
        %v1143 = vsub.f32 %v1126, %v1133
        %v1144 = vsub.f32 %v1127, %v1136
        %v1145 = vsub.f32 %v1128, %v1139
        %v1146 = vsub.f32 %v1129, %v1142
        %v1147 = vmul.f32 %v1143, 1.442695
        %v1148 = vpow.pop %v1147
        %v1149 = vmul.f32 %v1144, 1.442695
        %v1150 = vpow.pop %v1149
        %v1151 = vmul.f32 %v1145, 1.442695
        %v1152 = vpow.pop %v1151
        %v1153 = vmul.f32 %v1146, 1.442695
        %v1154 = vpow.pop %v1153
        %v1155 = vsel %vm1130, %v1148, 0.0
        %1156 = vadd.xlane.f32.xlu0 %v1155
        %v1157 = vpop.xlane.xlu0 %1156
        %v1158 = vsel %vm1130, %v1150, 0.0
        %1159 = vadd.xlane.f32.xlu0 %v1158
        %v1160 = vpop.xlane.xlu0 %1159
        %v1161 = vsel %vm1130, %v1152, 0.0
        %1162 = vadd.xlane.f32.xlu0 %v1161
        %v1163 = vpop.xlane.xlu0 %1162
        %v1164 = vsel %vm1130, %v1154, 0.0
        %1165 = vadd.xlane.f32.xlu0 %v1164
        %v1166 = vpop.xlane.xlu0 %1165
        %v1167 = vpack.c.bf16 %v1150, %v1148
        %v1168 = vpack.c.bf16 %v1154, %v1152
        %v1169 = vpack.c.bf16 %v974, %v970
        %v1170 = vpack.c.bf16 %v976, %v972
        %v1172 = vsel %vm1130, %v1167, 0
        %1174 = vmatprep.subr.bf16.mxu0 0
        %1175 = vmatpush1.bf16.msra.mxu0 %v1169
        %1176 = vmatprep.subr.bf16.mxu0 0
        %1177 = vmatpush1.bf16.msra.mxu0 0
        %1178 = vmatprep.subr.bf16.mxu0 0
        %1179 = vmatpush1.bf16.msra.mxu0 0
        %1180 = vmatprep.subr.bf16.mxu0 0
        %1181 = vmatpush1.bf16.msra.mxu0 0
        %1182 = vmatprep.subr.bf16.mxu0 0
        %1183 = vmatpush1.bf16.msra.mxu0 0
        %1184 = vmatprep.subr.bf16.mxu0 0
        %1185 = vmatpush1.bf16.msra.mxu0 0
        %1186 = vmatprep.subr.bf16.mxu0 0
        %1187 = vmatpush1.bf16.msra.mxu0 0
        %1188 = vmatprep.subr.bf16.mxu0 0
        %1189 = vmatpush1.bf16.msra.mxu0 0
        %1190 = vmatprep.subr.bf16.mxu0 0
        %1191 = vmatpush1.bf16.msra.mxu0 0
        %1192 = vmatprep.subr.bf16.mxu0 0
        %1193 = vmatpush1.bf16.msra.mxu0 0
        %1194 = vmatprep.subr.bf16.mxu0 0
        %1195 = vmatpush1.bf16.msra.mxu0 0
        %1196 = vmatprep.subr.bf16.mxu0 0
        %1197 = vmatpush1.bf16.msra.mxu0 0
        %1198 = vmatprep.subr.bf16.mxu0 0
        %1199 = vmatpush1.bf16.msra.mxu0 0
        %1200 = vmatprep.subr.bf16.mxu0 0
        %1201 = vmatpush1.bf16.msra.mxu0 0
        %1202 = vmatprep.subr.bf16.mxu0 0
        %1203 = vmatpush1.bf16.msra.mxu0 0
        %1204 = vmatprep.subr.bf16.mxu0 0
        %1205 = vmatpush1.bf16.msra.mxu0 0
        %1206 = vmatprep.mubr.bf16.mxu0 0
        %1207 = vmatmul.mubr.bf16.gmra.mrb[0].mxu0 %v1172
        %v1208 = vpop.f32.mrb[0].mxu0
        %v1209 = vadd.f32 0.0, %v1208
        %v1210 = vpop.f32.mrb[0].mxu0
        %v1211 = vpop.f32.mrb[0].mxu0
        %v1212 = vadd.f32 0.0, %v1211
        %v1213 = vpop.f32.mrb[0].mxu0
        %1214 = vdwg.mxu0
        %v1216 = vsel %vm1130, %v1168, 0
        %1218 = vmatprep.subr.bf16.mxu0 0
        %1219 = vmatpush1.bf16.msra.mxu0 %v1170
        %1220 = vmatprep.subr.bf16.mxu0 0
        %1221 = vmatpush1.bf16.msra.mxu0 0
        %1222 = vmatprep.subr.bf16.mxu0 0
        %1223 = vmatpush1.bf16.msra.mxu0 0
        %1224 = vmatprep.subr.bf16.mxu0 0
        %1225 = vmatpush1.bf16.msra.mxu0 0
        %1226 = vmatprep.subr.bf16.mxu0 0
        %1227 = vmatpush1.bf16.msra.mxu0 0
        %1228 = vmatprep.subr.bf16.mxu0 0
        %1229 = vmatpush1.bf16.msra.mxu0 0
        %1230 = vmatprep.subr.bf16.mxu0 0
        %1231 = vmatpush1.bf16.msra.mxu0 0
        %1232 = vmatprep.subr.bf16.mxu0 0
        %1233 = vmatpush1.bf16.msra.mxu0 0
        %1234 = vmatprep.subr.bf16.mxu0 0
        %1235 = vmatpush1.bf16.msra.mxu0 0
        %1236 = vmatprep.subr.bf16.mxu0 0
        %1237 = vmatpush1.bf16.msra.mxu0 0
        %1238 = vmatprep.subr.bf16.mxu0 0
        %1239 = vmatpush1.bf16.msra.mxu0 0
        %1240 = vmatprep.subr.bf16.mxu0 0
        %1241 = vmatpush1.bf16.msra.mxu0 0
        %1242 = vmatprep.subr.bf16.mxu0 0
        %1243 = vmatpush1.bf16.msra.mxu0 0
        %1244 = vmatprep.subr.bf16.mxu0 0
        %1245 = vmatpush1.bf16.msra.mxu0 0
        %1246 = vmatprep.subr.bf16.mxu0 0
        %1247 = vmatpush1.bf16.msra.mxu0 0
        %1248 = vmatprep.subr.bf16.mxu0 0
        %1249 = vmatpush1.bf16.msra.mxu0 0
        %1250 = vmatprep.mubr.bf16.mxu0 0
        %1251 = vmatmul.mubr.bf16.gmra.mrb[0].mxu0 %v1216
        %v1252 = vpop.f32.mrb[0].mxu0
        %v1253 = vadd.f32 0.0, %v1252
        %v1254 = vpop.f32.mrb[0].mxu0
        %v1255 = vpop.f32.mrb[0].mxu0
        %v1256 = vadd.f32 0.0, %v1255
        %v1257 = vpop.f32.mrb[0].mxu0
        %1258 = vdwg.mxu0
        %v1259 = vrcp.pop %v1157
        %v1260 = vrcp.pop %v1160
        %v1261 = vrcp.pop %v1163
        %v1262 = vrcp.pop %v1166
        %v1263 = vmul.f32 %v1209, %v1259
        %v1264 = vmul.f32 %v1212, %v1260
        %v1265 = vmul.f32 %v1253, %v1261
        %v1266 = vmul.f32 %v1256, %v1262
        %v1267 = vpack.c.bf16 %v1264, %v1263
        %v1268 = vpack.c.bf16 %v1266, %v1265
        %v1269 = vld [vmem:[#allocation7] sm:$0xff]
        %v1270 = vld [vmem:[#allocation7 + $0x8] sm:$0xff]
        %v1271 = vld [vmem:[#allocation7 + $0x10] sm:$0xff]
        %v1272 = vld [vmem:[#allocation7 + $0x18] sm:$0xff]
        %v1273 = vld [vmem:[#allocation7 + $0x20] sm:$0xff]
        %v1274 = vld [vmem:[#allocation7 + $0x28] sm:$0xff]
        %v1275 = vld [vmem:[#allocation7 + $0x30] sm:$0xff]
        %v1276 = vld [vmem:[#allocation7 + $0x38] sm:$0xff]
        %v1277 = vld [vmem:[#allocation7 + $0x40] sm:$0xff]
        %v1278 = vld [vmem:[#allocation7 + $0x48] sm:$0xff]
        %v1279 = vld [vmem:[#allocation7 + $0x50] sm:$0xff]
        %v1280 = vld [vmem:[#allocation7 + $0x58] sm:$0xff]
        %v1281 = vld [vmem:[#allocation7 + $0x60] sm:$0xff]
        %v1282 = vld [vmem:[#allocation7 + $0x68] sm:$0xff]
        %v1283 = vld [vmem:[#allocation7 + $0x70] sm:$0xff]
        %v1284 = vld [vmem:[#allocation7 + $0x78] sm:$0xff]
        %v1285 = vld [vmem:[#allocation7 + $0x80] sm:$0xff]
        %v1286 = vld [vmem:[#allocation7 + $0x88] sm:$0xff]
        %v1287 = vld [vmem:[#allocation7 + $0x90] sm:$0xff]
        %v1288 = vld [vmem:[#allocation7 + $0x98] sm:$0xff]
        %v1289 = vld [vmem:[#allocation7 + $0xa0] sm:$0xff]
        %v1290 = vld [vmem:[#allocation7 + $0xa8] sm:$0xff]
        %v1291 = vld [vmem:[#allocation7 + $0xb0] sm:$0xff]
        %v1292 = vld [vmem:[#allocation7 + $0xb8] sm:$0xff]
        %v1293 = vld [vmem:[#allocation7 + $0xc0] sm:$0xff]
        %v1294 = vld [vmem:[#allocation7 + $0xc8] sm:$0xff]
        %v1295 = vld [vmem:[#allocation7 + $0xd0] sm:$0xff]
        %v1296 = vld [vmem:[#allocation7 + $0xd8] sm:$0xff]
        %v1297 = vld [vmem:[#allocation7 + $0xe0] sm:$0xff]
        %v1298 = vld [vmem:[#allocation7 + $0xe8] sm:$0xff]
        %v1299 = vld [vmem:[#allocation7 + $0xf0] sm:$0xff]
        %v1300 = vld [vmem:[#allocation7 + $0xf8] sm:$0xff]
        %v1333 = vunpack.c.l.b16 %v1269
        %v1334 = vunpack.c.h.b16 %v1269
        %v1335 = vunpack.c.l.b16 %v1270
        %v1336 = vunpack.c.h.b16 %v1270
        %v1337 = vunpack.c.l.b16 %v1271
        %v1338 = vunpack.c.h.b16 %v1271
        %v1339 = vunpack.c.l.b16 %v1272
        %v1340 = vunpack.c.h.b16 %v1272
        %v1341 = vunpack.c.l.b16 %v1273
        %v1342 = vunpack.c.h.b16 %v1273
        %v1343 = vunpack.c.l.b16 %v1274
        %v1344 = vunpack.c.h.b16 %v1274
        %v1345 = vunpack.c.l.b16 %v1275
        %v1346 = vunpack.c.h.b16 %v1275
        %v1347 = vunpack.c.l.b16 %v1276
        %v1348 = vunpack.c.h.b16 %v1276
        %v1349 = vunpack.c.l.b16 %v1277
        %v1350 = vunpack.c.h.b16 %v1277
        %v1351 = vunpack.c.l.b16 %v1278
        %v1352 = vunpack.c.h.b16 %v1278
        %v1353 = vunpack.c.l.b16 %v1279
        %v1354 = vunpack.c.h.b16 %v1279
        %v1355 = vunpack.c.l.b16 %v1280
        %v1356 = vunpack.c.h.b16 %v1280
        %v1357 = vunpack.c.l.b16 %v1281
        %v1358 = vunpack.c.h.b16 %v1281
        %v1359 = vunpack.c.l.b16 %v1282
        %v1360 = vunpack.c.h.b16 %v1282
        %v1361 = vunpack.c.l.b16 %v1283
        %v1362 = vunpack.c.h.b16 %v1283
        %v1363 = vunpack.c.l.b16 %v1284
        %v1364 = vunpack.c.h.b16 %v1284
        %v1365 = vunpack.c.l.b16 %v1285
        %v1366 = vunpack.c.h.b16 %v1285
        %v1367 = vunpack.c.l.b16 %v1286
        %v1368 = vunpack.c.h.b16 %v1286
        %v1369 = vunpack.c.l.b16 %v1287
        %v1370 = vunpack.c.h.b16 %v1287
        %v1371 = vunpack.c.l.b16 %v1288
        %v1372 = vunpack.c.h.b16 %v1288
        %v1373 = vunpack.c.l.b16 %v1289
        %v1374 = vunpack.c.h.b16 %v1289
        %v1375 = vunpack.c.l.b16 %v1290
        %v1376 = vunpack.c.h.b16 %v1290
        %v1377 = vunpack.c.l.b16 %v1291
        %v1378 = vunpack.c.h.b16 %v1291
        %v1379 = vunpack.c.l.b16 %v1292
        %v1380 = vunpack.c.h.b16 %v1292
        %v1381 = vunpack.c.l.b16 %v1293
        %v1382 = vunpack.c.h.b16 %v1293
        %v1383 = vunpack.c.l.b16 %v1294
        %v1384 = vunpack.c.h.b16 %v1294
        %v1385 = vunpack.c.l.b16 %v1295
        %v1386 = vunpack.c.h.b16 %v1295
        %v1387 = vunpack.c.l.b16 %v1296
        %v1388 = vunpack.c.h.b16 %v1296
        %v1389 = vunpack.c.l.b16 %v1297
        %v1390 = vunpack.c.h.b16 %v1297
        %v1391 = vunpack.c.l.b16 %v1298
        %v1392 = vunpack.c.h.b16 %v1298
        %v1393 = vunpack.c.l.b16 %v1299
        %v1394 = vunpack.c.h.b16 %v1299
        %v1395 = vunpack.c.l.b16 %v1300
        %v1396 = vunpack.c.h.b16 %v1300
        %v1397 = vpack.c.b16 %v1335, %v1333
        %v1398 = vpack.c.b16 %v1336, %v1334
        %v1399 = vpack.c.b16 %v1339, %v1337
        %v1400 = vpack.c.b16 %v1340, %v1338
        %v1401 = vpack.c.b16 %v1343, %v1341
        %v1402 = vpack.c.b16 %v1344, %v1342
        %v1403 = vpack.c.b16 %v1347, %v1345
        %v1404 = vpack.c.b16 %v1348, %v1346
        %v1405 = vpack.c.b16 %v1351, %v1349
        %v1406 = vpack.c.b16 %v1352, %v1350
        %v1407 = vpack.c.b16 %v1355, %v1353
        %v1408 = vpack.c.b16 %v1356, %v1354
        %v1409 = vpack.c.b16 %v1359, %v1357
        %v1410 = vpack.c.b16 %v1360, %v1358
        %v1411 = vpack.c.b16 %v1363, %v1361
        %v1412 = vpack.c.b16 %v1364, %v1362
        %v1413 = vpack.c.b16 %v1367, %v1365
        %v1414 = vpack.c.b16 %v1368, %v1366
        %v1415 = vpack.c.b16 %v1371, %v1369
        %v1416 = vpack.c.b16 %v1372, %v1370
        %v1417 = vpack.c.b16 %v1375, %v1373
        %v1418 = vpack.c.b16 %v1376, %v1374
        %v1419 = vpack.c.b16 %v1379, %v1377
        %v1420 = vpack.c.b16 %v1380, %v1378
        %v1421 = vpack.c.b16 %v1383, %v1381
        %v1422 = vpack.c.b16 %v1384, %v1382
        %v1423 = vpack.c.b16 %v1387, %v1385
        %v1424 = vpack.c.b16 %v1388, %v1386
        %v1425 = vpack.c.b16 %v1391, %v1389
        %v1426 = vpack.c.b16 %v1392, %v1390
        %v1427 = vpack.c.b16 %v1395, %v1393
        %v1428 = vpack.c.b16 %v1396, %v1394
        %1461 = vmatprep.subr.bf16.mxu0 %v1398
        %1462 = vmatpush1.bf16.msra.mxu0 %v1397
        %1463 = vmatprep.subr.bf16.mxu0 %v1400
        %1464 = vmatpush1.bf16.msra.mxu0 %v1399
        %1465 = vmatprep.subr.bf16.mxu0 %v1402
        %1466 = vmatpush1.bf16.msra.mxu0 %v1401
        %1467 = vmatprep.subr.bf16.mxu0 %v1404
        %1468 = vmatpush1.bf16.msra.mxu0 %v1403
        %1469 = vmatprep.subr.bf16.mxu0 %v1406
        %1470 = vmatpush1.bf16.msra.mxu0 %v1405
        %1471 = vmatprep.subr.bf16.mxu0 %v1408
        %1472 = vmatpush1.bf16.msra.mxu0 %v1407
        %1473 = vmatprep.subr.bf16.mxu0 %v1410
        %1474 = vmatpush1.bf16.msra.mxu0 %v1409
        %1475 = vmatprep.subr.bf16.mxu0 %v1412
        %1476 = vmatpush1.bf16.msra.mxu0 %v1411
        %1477 = vmatprep.subr.bf16.mxu0 %v1414
        %1478 = vmatpush1.bf16.msra.mxu0 %v1413
        %1479 = vmatprep.subr.bf16.mxu0 %v1416
        %1480 = vmatpush1.bf16.msra.mxu0 %v1415
        %1481 = vmatprep.subr.bf16.mxu0 %v1418
        %1482 = vmatpush1.bf16.msra.mxu0 %v1417
        %1483 = vmatprep.subr.bf16.mxu0 %v1420
        %1484 = vmatpush1.bf16.msra.mxu0 %v1419
        %1485 = vmatprep.subr.bf16.mxu0 %v1422
        %1486 = vmatpush1.bf16.msra.mxu0 %v1421
        %1487 = vmatprep.subr.bf16.mxu0 %v1424
        %1488 = vmatpush1.bf16.msra.mxu0 %v1423
        %1489 = vmatprep.subr.bf16.mxu0 %v1426
        %1490 = vmatpush1.bf16.msra.mxu0 %v1425
        %1491 = vmatprep.subr.bf16.mxu0 %v1428
        %1492 = vmatpush1.bf16.msra.mxu0 %v1427
        %1493 = vmatprep.mubr.bf16.mxu0 %v1268
        %1494 = vmatmul.mubr.bf16.gmra.mrb[0].mxu0 %v1267
        %v1495 = vpop.f32.mrb[0].mxu0
        %v1496 = vadd.f32 0.0, %v1495
        %v1497 = vpop.f32.mrb[0].mxu0
        %v1498 = vadd.f32 0.0, %v1497
        %v1499 = vpop.f32.mrb[0].mxu0
        %v1500 = vadd.f32 0.0, %v1499
        %v1501 = vpop.f32.mrb[0].mxu0
        %v1502 = vadd.f32 0.0, %v1501
        %1503 = vdwg.mxu0
        %1504 = vst [vmem:[%s259] sm:$0xff] %v1496
        %1505 = vst [vmem:[%s259 + $0x8] sm:$0xff] %v1498
        %1506 = vst [vmem:[%s259 + $0x10] sm:$0xff] %v1500
        %1507 = vst [vmem:[%s259 + $0x18] sm:$0xff] %v1502
        %s1508 = sand.u32 %s120, 1
        %s1509 = scalar_lea.sflag [#allocation4], %s1508
        %s1510 = sand.u32 %s120, 1
        %s1511 = smul.addr %s1510, 32
        %s1512 = scalar_lea.vmem [#allocation10], %s1511
        // Predicated region
        $region53: #{tpu_custom_call.1} parent=35 // pred_check
          %p1513 = pneg %p130
        $region54: #{tpu_custom_call.1} parent=35 // pred_check_branch
          %1515 = sbr.rel (%p1513) target = $region56
        $region55: #{tpu_custom_call.1} parent=35 // pred_region
          %s1517 = ssub.s32 512, 512
          %1518 = vsyncadd %s1509, %s1517
          %s1519 = smul.addr %s23, 4
          %s1520 = smul.addr %s1519, 128
          %s1521 = scalar_lea.hbm %s4, %s1520
          %s1522 = sshll.u32 %s1512, 4
          %s1523 = int_to_ptr.vmem [resolvable:$true] %s1522
          %1528 = dma.vmem_to_hbm [thread:$0]  %s1523, 512, %s1521, %s1509, 256, 256, 16
        $region56: #{tpu_custom_call.1} parent=35 // pred_fallthru
          _
      $region36: #{tpu_custom_call.1} parent=5 // pred_fallthru
        _
      %p1529 = scmp.le.s32.totalorder 2, %s18
      // Predicated region
      $region57: #{tpu_custom_call.1} parent=5 // pred_check
        %p1530 = pneg %p1529
      $region58: #{tpu_custom_call.1} parent=5 // pred_check_branch
        %1532 = sbr.rel (%p1530) target = $region60
      $region59: #{tpu_custom_call.1} parent=5 // pred_region
        %s1533 = ssub.s32 %s18, 2
        // Predicated region
        $region61: #{tpu_custom_call.1} parent=59 // pred_check
          %p1534 = pneg %p136
        $region62: #{tpu_custom_call.1} parent=59 // pred_check_branch
          %1536 = sbr.rel (%p1534) target = $region64
        $region63: #{tpu_custom_call.1} parent=59 // pred_region
          %s1537 = sand.u32 %s121, 1
          %s1538 = scalar_lea.sflag [#allocation4], %s1537
          %s1539 = sand.u32 %s121, 1
          %s1540 = smul.addr %s1539, 32
          %s1541 = scalar_lea.vmem [#allocation10], %s1540
          %1542 = dma.done %s1538, 512
        $region64: #{tpu_custom_call.1} parent=59 // pred_fallthru
          _
      $region60: #{tpu_custom_call.1} parent=5 // pred_fallthru
        _
    $region6: #{tpu_custom_call.1} parent=1 // loop_footer
      %s22 = sadd.s32 1, %s18
    $region7: #{tpu_custom_call.1} parent=1 // loop_footer_branch
      %17 = sbr.rel target = $region3
    $region8: #{tpu_custom_call.1} parent=1 // loop_exit
      _
    %1543 = vsyncpa [#allocation3], 1
    %s1544 = scalar_lea.sflag [#allocation3], 1
    %1545 = vsyncpa %s1544, 1
    %1546 = vsyncpa [#allocation6], 1
    %1547 = vsyncpa [#allocation9], 1
    %1548 = vsyncpa [#allocation4], 1
    %s1549 = scalar_lea.sflag [#allocation4], 1
    %1550 = vsyncpa %s1549, 1

</llo_original>
